<compile_context>
chip_gen: v7x
topology: tpu7x:2x2x1
jax: 0.10.0
libtpu: 0.0.40
codegen_flags: <defaults>
</compile_context>

<pallas_src>
import functools

import numpy as np

import jax
import jax.numpy as jnp
from jax import lax
from jax.experimental import pallas as pl
from jax.experimental.pallas import tpu as pltpu


def _block_kernel(x_ref, mask_ref, params_ref, wqkv_ref, wproj_ref,
                  w1_ref, w2_ref, o_ref, *, n_head, eps):
    """One grid step = one batch-block of flattened rows (Bb samples * T tokens)."""
    N, C = x_ref.shape
    H = n_head
    hs = C // H
    F = w1_ref.shape[1]                      # 4 * C
    cd = wqkv_ref.dtype                      # MXU operand dtype (bf16 on v6e/v7x)

    # Packed small parameters: one (8, 4C) f32 tile, sliced by row (cheap).
    params = params_ref[...]
    g1, b1 = params[0:1, :C], params[1:2, :C]
    bproj = params[2:3, :C]
    g2, b2 = params[3:4, :C], params[4:5, :C]
    bf2 = params[5:6, :C]
    bf1 = params[6:7, :F]

    # Residual stream for the whole batch-block, kept in f32.
    x = x_ref[...].astype(jnp.float32)                        # (N, C)

    def layernorm(h, g, b):
        mu = jnp.mean(h, axis=-1, keepdims=True)
        var = jnp.mean(jnp.square(h - mu), axis=-1, keepdims=True)
        return (h - mu) * lax.rsqrt(var + eps) * g + b

    # ------------------------- self-attention -------------------------
    h1 = layernorm(x, g1, b1)                                 # (N, C) f32

    # Fused QKV projection for all heads and all rows in ONE MXU matmul.
    # The C**-0.5 scale (the module scales by n_embd, not head_size) is
    # pre-baked into the Q columns by the wrapper -> zero in-kernel cost.
    qkv = jnp.dot(h1.astype(cd), wqkv_ref[...],
                  preferred_element_type=jnp.float32)         # (N, 3C) f32

    # Heads-batched layout (H, N, hs): head slices stacked on the outer axis.
    def split_heads(base):
        return jnp.stack(
            [qkv[:, base + h * hs: base + (h + 1) * hs] for h in range(H)],
            axis=0).astype(cd)                                # (H, N, hs)

    q = split_heads(0)
    k = split_heads(C)
    v = split_heads(2 * C)

    # Scores for every head in a single batched dot_general (contract on hs,
    # no k transpose materialized), then ONE softmax over all heads.
    s = lax.dot_general(q, k, (((2,), (2,)), ((0,), (0,))),
                        preferred_element_type=jnp.float32)   # (H, N, N)
    # Additive block-diagonal causal mask (0 / -1e30), hoisted to the wrapper.
    s = s + mask_ref[...][None, :, :]

    m = jnp.max(s, axis=-1, keepdims=True)
    p = jnp.exp(s - m)
    p = p * pl.reciprocal(jnp.sum(p, axis=-1, keepdims=True), approx=False)
    # TODO(synk): attention dropout is identity at eval / p=0.0.

    o = lax.dot_general(p.astype(cd), v, (((2,), (1,)), ((0,), (0,))),
                        preferred_element_type=jnp.float32)   # (H, N, hs)

    # Output projection WITHOUT concatenating heads on the lane axis:
    # per-head (hs, C) slabs of W_proj, batched matmul, VPU sum over heads.
    attn = jnp.sum(
        lax.dot_general(o.astype(cd), wproj_ref[...],
                        (((2,), (1,)), ((0,), (0,))),
                        preferred_element_type=jnp.float32),  # (H, N, C)
        axis=0) + bproj
    # TODO(synk): projection dropout is identity at eval / p=0.0.
    x = x + attn                                              # residual 1

    # --------------------------- feed-forward --------------------------
    h2 = layernorm(x, g2, b2)
    a = jnp.dot(h2.astype(cd), w1_ref[...],
                preferred_element_type=jnp.float32) + bf1     # (N, 4C)
    a = jnp.maximum(a, 0.0)                                   # ReLU
    ff = jnp.dot(a.astype(cd), w2_ref[...],
                 preferred_element_type=jnp.float32) + bf2    # (N, C)
    # TODO(synk): FFN dropout is identity at eval / p=0.0.
    x = x + ff                                                # residual 2

    o_ref[...] = x.astype(o_ref.dtype)
    # TODO(synk): for large T, replace the (H, N, N) score matrix with a
    # flash-style KV-tiled online softmax (causal block skipping) and tile the
    # (N, 4C) FFN intermediate; re-derive tile sizes against v7x's 64 MiB VMEM.


def block_forward(x, g1, b1, wq, wk, wv, wproj, bproj, g2, b2, w1, bf1, w2, bf2,
                  *, n_head, batch_block=None, compute_dtype=None):
    """Fused Block forward.

    x: (B, T, C).  wq/wk/wv/wproj: (C, C), w1: (C, 4C), w2: (4C, C), all stored
    as (in, out) (transpose of nn.Linear.weight); heads concatenated on the
    output columns of wq/wk/wv.  `compute_dtype` sets the MXU operand dtype
    (pass jnp.bfloat16 on v6e/v7x); accumulation / LN / softmax stay f32.
    """
    B, T, C = x.shape
    F = w1.shape[1]                                    # 4 * C
    hs = C // n_head

    Bb = B if batch_block is None else batch_block
    assert B % Bb == 0, "batch_block must divide the batch"
    nb = B // Bb
    N = Bb * T                                         # rows per grid step

    cd = x.dtype if compute_dtype is None else compute_dtype

    # Fused QKV weight, attention scale baked into the Q columns.  Weights are
    # cast to the MXU operand dtype ONCE here, not per grid step.
    scale = C ** -0.5                                  # module scales by n_embd
    wqkv = jnp.concatenate([wq * scale, wk, wv], axis=1).astype(cd)   # (C, 3C)
    wproj_r = wproj.reshape(n_head, hs, C).astype(cd)                 # (H, hs, C)
    w1c = w1.astype(cd)
    w2c = w2.astype(cd)

    # Pack the seven small 1-D parameters into a single (8, 4C) f32 tile
    # (one resident DMA instead of seven tiny ones).
    def _row(v):
        v = jnp.asarray(v, jnp.float32).reshape(1, -1)
        return jnp.pad(v, ((0, 0), (0, F - v.shape[1])))
    params = jnp.concatenate(
        [_row(g1), _row(b1), _row(bproj), _row(g2), _row(b2), _row(bf2),
         _row(bf1), jnp.zeros((1, F), jnp.float32)], axis=0)          # (8, 4C)

    # Static block-diagonal causal additive mask over the flattened rows of one
    # batch-block: row i attends to row j iff same sample and j <= i.
    ri = np.arange(N)[:, None]
    ci = np.arange(N)[None, :]
    mask = jnp.asarray(
        np.where((ci <= ri) & ((ri // T) == (ci // T)), 0.0, -1e30),
        dtype=jnp.float32)                                            # (N, N)

    def _resident(shape):
        return pl.BlockSpec(shape, lambda i: (0,) * len(shape))

    kernel = functools.partial(_block_kernel, n_head=n_head, eps=1e-5)

    out = pl.pallas_call(
        kernel,
        out_shape=jax.ShapeDtypeStruct((B * T, C), x.dtype),
        grid_spec=pltpu.PrefetchScalarGridSpec(
            num_scalar_prefetch=0,
            grid=(nb,),
            in_specs=[
                pl.BlockSpec((N, C), lambda i: (i, 0)),   # x rows of this block
                _resident((N, N)),                        # additive causal mask
                _resident((8, F)),                        # packed 1-D params
                _resident((C, 3 * C)),                    # fused Wqkv (Q scaled)
                _resident((n_head, hs, C)),               # W_proj per head
                _resident((C, F)),                        # FFN W1
                _resident((F, C)),                        # FFN W2
            ],
            out_specs=pl.BlockSpec((N, C), lambda i: (i, 0)),
        ),
        compiler_params=pltpu.CompilerParams(
            dimension_semantics=("parallel",),
        ),
    )(x.reshape(B * T, C), mask, params, wqkv, wproj_r, w1c, w2c)
    # TODO(synk): for a stack of Blocks, fuse several layers into one
    # pallas_call (residual stream stays in VMEM; stream weights in with
    # emit_pipeline) instead of one pallas_call per Block.
    # TODO(synk): on v7x with nb > 1, mark the resident weight specs
    # pipeline_mode=pl.Buffered(1) to drop the redundant double buffer.
    return out.reshape(B, T, C)


def block_reference(x, g1, b1, wq, wk, wv, wproj, bproj, g2, b2, w1, bf1, w2,
                    bf2, *, n_head):
    """Pure-JAX reference mirroring the PyTorch Block forward (eval mode)."""
    B, T, C = x.shape
    hs = C // n_head

    def ln(h, g, b, eps=1e-5):
        mu = h.mean(-1, keepdims=True)
        var = ((h - mu) ** 2).mean(-1, keepdims=True)
        return (h - mu) / jnp.sqrt(var + eps) * g + b

    h = ln(x, g1, b1)
    q = (h @ wq).reshape(B, T, n_head, hs).transpose(0, 2, 1, 3)
    k = (h @ wk).reshape(B, T, n_head, hs).transpose(0, 2, 1, 3)
    v = (h @ wv).reshape(B, T, n_head, hs).transpose(0, 2, 1, 3)
    wei = jnp.einsum('bhqd,bhkd->bhqk', q, k) * (C ** -0.5)   # scale by n_embd
    tril = jnp.tril(jnp.ones((T, T), dtype=bool))
    wei = jnp.where(tril, wei, -jnp.inf)
    wei = jax.nn.softmax(wei, axis=-1)
    o = jnp.einsum('bhqk,bhkd->bhqd', wei, v).transpose(0, 2, 1, 3).reshape(B, T, C)
    x = x + o @ wproj + bproj
    h2 = ln(x, g2, b2)
    ff = jnp.maximum(h2 @ w1 + bf1, 0.0) @ w2 + bf2
    return x + ff


if __name__ == "__main__":
    # Shapes consistent with the module: block_size=T=8, n_embd=32, n_head=4.
    B, T, C, n_head = 2, 8, 32, 4
    hs = C // n_head
    dt = jnp.float32

    key = jax.random.PRNGKey(0)
    keys = jax.random.split(key, 14)

    x = jax.random.normal(keys[0], (B, T, C), dtype=dt)

    # nn.Linear weights are (out, in); we store them transposed as (in, out).
    def linmat(k, out_dim, in_dim):
        return (jax.random.normal(k, (out_dim, in_dim), dtype=dt)
                * in_dim ** -0.5).T

    wq = jnp.concatenate(
        [linmat(k, hs, C) for k in jax.random.split(keys[1], n_head)], axis=1)
    wk = jnp.concatenate(
        [linmat(k, hs, C) for k in jax.random.split(keys[2], n_head)], axis=1)
    wv = jnp.concatenate(
        [linmat(k, hs, C) for k in jax.random.split(keys[3], n_head)], axis=1)

    wproj = linmat(keys[4], C, C)
    bproj = 0.02 * jax.random.normal(keys[5], (C,), dtype=dt)
    g1 = 1.0 + 0.05 * jax.random.normal(keys[6], (C,), dtype=dt)
    b1 = 0.05 * jax.random.normal(keys[7], (C,), dtype=dt)
    g2 = 1.0 + 0.05 * jax.random.normal(keys[8], (C,), dtype=dt)
    b2 = 0.05 * jax.random.normal(keys[9], (C,), dtype=dt)
    w1 = linmat(keys[10], 4 * C, C)
    bf1 = 0.02 * jax.random.normal(keys[11], (4 * C,), dtype=dt)
    w2 = linmat(keys[12], C, 4 * C)
    bf2 = 0.02 * jax.random.normal(keys[13], (C,), dtype=dt)

    args = (x, g1, b1, wq, wk, wv, wproj, bproj, g2, b2, w1, bf1, w2, bf2)

    # f32 path (MXU operands in the input dtype).
    out = block_forward(*args, n_head=n_head)
    out = jax.block_until_ready(out)

    # High-precision reference (removes XLA's default bf16-pass f32 matmuls as
    # a confounder when comparing against the kernel).
    with jax.default_matmul_precision("highest"):
        ref = block_reference(*args, n_head=n_head)
    ref = jax.block_until_ready(ref)

    assert out.shape == (B, T, C), out.shape
    err_f32 = float(jnp.max(jnp.abs(out - ref)))
    # Band covers the worst case where the in-kernel f32 dots run in the MXU's
    # reduced-precision pass mode; measured error is carried in the message.
    assert jnp.allclose(out, ref, atol=2e-2, rtol=2e-2), err_f32

    # bf16 MXU-operand path (recommended on v6e/v7x); accumulation stays f32.
    out_bf16 = block_forward(*args, n_head=n_head, compute_dtype=jnp.bfloat16)
    out_bf16 = jax.block_until_ready(out_bf16)
    err_bf16 = float(jnp.max(jnp.abs(out_bf16 - ref)))
    assert jnp.allclose(out_bf16, ref, atol=3e-1, rtol=1e-1), err_bf16

    print("KERNEL_OK")
</pallas_src>

<mosaic_0001>
module attributes {stable_mosaic.version = 11 : i64} {
  func.func @_block_kernel(%arg0: i32, %arg1: memref<16x32xf32, #tpu.memory_space<vmem>>, %arg2: memref<16x16xf32, #tpu.memory_space<vmem>>, %arg3: memref<8x128xf32, #tpu.memory_space<vmem>>, %arg4: memref<32x96xf32, #tpu.memory_space<vmem>>, %arg5: memref<4x8x32xf32, #tpu.memory_space<vmem>>, %arg6: memref<32x128xf32, #tpu.memory_space<vmem>>, %arg7: memref<128x32xf32, #tpu.memory_space<vmem>>, %arg8: memref<16x32xf32, #tpu.memory_space<vmem>>) attributes {dimension_semantics = [#tpu.dimension_semantics<parallel>], iteration_bounds = array<i64: 1>, scalar_prefetch = 0 : i64, scratch_operands = 0 : i64, tpu.core_type = #tpu.core_type<tc>, window_params = [{transform_indices = @transform_0, window_bounds = array<i64: 16, 32>}, {pipeline_mode = #tpu.pipeline_mode<synchronous>, transform_indices = @transform_1, window_bounds = array<i64: 16, 16>}, {pipeline_mode = #tpu.pipeline_mode<synchronous>, transform_indices = @transform_2, window_bounds = array<i64: 8, 128>}, {pipeline_mode = #tpu.pipeline_mode<synchronous>, transform_indices = @transform_3, window_bounds = array<i64: 32, 96>}, {pipeline_mode = #tpu.pipeline_mode<synchronous>, transform_indices = @transform_4, window_bounds = array<i64: 4, 8, 32>}, {pipeline_mode = #tpu.pipeline_mode<synchronous>, transform_indices = @transform_5, window_bounds = array<i64: 32, 128>}, {pipeline_mode = #tpu.pipeline_mode<synchronous>, transform_indices = @transform_6, window_bounds = array<i64: 128, 32>}, {transform_indices = @transform_7, window_bounds = array<i64: 16, 32>}]} {
    %c0 = arith.constant 0 : index
    %c0_0 = arith.constant 0 : index
    %0 = vector.load %arg3[%c0, %c0_0] : memref<8x128xf32, #tpu.memory_space<vmem>>, vector<8x128xf32>
    %1 = vector.extract_strided_slice %0 {offsets = [0, 0], sizes = [1, 32], strides = [1, 1]} : vector<8x128xf32> to vector<1x32xf32>
    %2 = vector.extract_strided_slice %0 {offsets = [1, 0], sizes = [1, 32], strides = [1, 1]} : vector<8x128xf32> to vector<1x32xf32>
    %3 = vector.extract_strided_slice %0 {offsets = [2, 0], sizes = [1, 32], strides = [1, 1]} : vector<8x128xf32> to vector<1x32xf32>
    %4 = vector.extract_strided_slice %0 {offsets = [3, 0], sizes = [1, 32], strides = [1, 1]} : vector<8x128xf32> to vector<1x32xf32>
    %5 = vector.extract_strided_slice %0 {offsets = [4, 0], sizes = [1, 32], strides = [1, 1]} : vector<8x128xf32> to vector<1x32xf32>
    %6 = vector.extract_strided_slice %0 {offsets = [5, 0], sizes = [1, 32], strides = [1, 1]} : vector<8x128xf32> to vector<1x32xf32>
    %7 = vector.extract_strided_slice %0 {offsets = [6, 0], sizes = [1, 128], strides = [1, 1]} : vector<8x128xf32> to vector<1x128xf32>
    %c0_1 = arith.constant 0 : index
    %c0_2 = arith.constant 0 : index
    %8 = vector.load %arg1[%c0_1, %c0_2] : memref<16x32xf32, #tpu.memory_space<vmem>>, vector<16x32xf32>
    %cst = arith.constant dense<0.000000e+00> : vector<16xf32>
    %9 = vector.multi_reduction <add>, %8, %cst [1] : vector<16x32xf32> to vector<16xf32>
    %10 = vector.shape_cast %9 : vector<16xf32> to vector<16x1xf32>
    %cst_3 = arith.constant 3.200000e+01 : f32
    %11 = vector.broadcast %cst_3 : f32 to vector<16x1xf32>
    %12 = arith.divf %10, %11 : vector<16x1xf32>
    %13 = vector.broadcast %12 : vector<16x1xf32> to vector<16x32xf32>
    %14 = arith.subf %8, %13 : vector<16x32xf32>
    %15 = arith.mulf %14, %14 : vector<16x32xf32>
    %cst_4 = arith.constant dense<0.000000e+00> : vector<16xf32>
    %16 = vector.multi_reduction <add>, %15, %cst_4 [1] : vector<16x32xf32> to vector<16xf32>
    %17 = vector.shape_cast %16 : vector<16xf32> to vector<16x1xf32>
    %cst_5 = arith.constant 3.200000e+01 : f32
    %18 = vector.broadcast %cst_5 : f32 to vector<16x1xf32>
    %19 = arith.divf %17, %18 : vector<16x1xf32>
    %20 = vector.broadcast %12 : vector<16x1xf32> to vector<16x32xf32>
    %21 = arith.subf %8, %20 : vector<16x32xf32>
    %cst_6 = arith.constant 9.99999974E-6 : f32
    %22 = vector.broadcast %cst_6 : f32 to vector<16x1xf32>
    %23 = arith.addf %19, %22 : vector<16x1xf32>
    %24 = math.rsqrt %23 : vector<16x1xf32>
    %25 = vector.broadcast %24 : vector<16x1xf32> to vector<16x32xf32>
    %26 = arith.mulf %21, %25 : vector<16x32xf32>
    %27 = vector.broadcast %1 : vector<1x32xf32> to vector<16x32xf32>
    %28 = arith.mulf %26, %27 : vector<16x32xf32>
    %29 = vector.broadcast %2 : vector<1x32xf32> to vector<16x32xf32>
    %30 = arith.addf %28, %29 : vector<16x32xf32>
    %c0_7 = arith.constant 0 : index
    %c0_8 = arith.constant 0 : index
    %31 = vector.load %arg4[%c0_7, %c0_8] : memref<32x96xf32, #tpu.memory_space<vmem>>, vector<32x96xf32>
    %cst_9 = arith.constant dense<0.000000e+00> : vector<16x96xf32>
    %32 = tpu.matmul %30, %31, %cst_9 {dimension_numbers = #tpu.dot_dimension_numbers<[1], [0], [0], [1], [0, 0, 1, 1], [], []>} : vector<16x32xf32>, vector<32x96xf32>, vector<16x96xf32> -> vector<16x96xf32>
    %33 = vector.extract_strided_slice %32 {offsets = [0, 0], sizes = [16, 8], strides = [1, 1]} : vector<16x96xf32> to vector<16x8xf32>
    %34 = vector.extract_strided_slice %32 {offsets = [0, 8], sizes = [16, 8], strides = [1, 1]} : vector<16x96xf32> to vector<16x8xf32>
    %35 = vector.extract_strided_slice %32 {offsets = [0, 16], sizes = [16, 8], strides = [1, 1]} : vector<16x96xf32> to vector<16x8xf32>
    %36 = vector.extract_strided_slice %32 {offsets = [0, 24], sizes = [16, 8], strides = [1, 1]} : vector<16x96xf32> to vector<16x8xf32>
    %37 = vector.shape_cast %33 : vector<16x8xf32> to vector<1x16x8xf32>
    %38 = vector.shape_cast %34 : vector<16x8xf32> to vector<1x16x8xf32>
    %39 = vector.shape_cast %35 : vector<16x8xf32> to vector<1x16x8xf32>
    %40 = vector.shape_cast %36 : vector<16x8xf32> to vector<1x16x8xf32>
    %41 = tpu.concatenate %37, %38, %39, %40 in 0 : vector<1x16x8xf32>, vector<1x16x8xf32>, vector<1x16x8xf32>, vector<1x16x8xf32> -> vector<4x16x8xf32>
    %42 = vector.extract_strided_slice %32 {offsets = [0, 32], sizes = [16, 8], strides = [1, 1]} : vector<16x96xf32> to vector<16x8xf32>
    %43 = vector.extract_strided_slice %32 {offsets = [0, 40], sizes = [16, 8], strides = [1, 1]} : vector<16x96xf32> to vector<16x8xf32>
    %44 = vector.extract_strided_slice %32 {offsets = [0, 48], sizes = [16, 8], strides = [1, 1]} : vector<16x96xf32> to vector<16x8xf32>
    %45 = vector.extract_strided_slice %32 {offsets = [0, 56], sizes = [16, 8], strides = [1, 1]} : vector<16x96xf32> to vector<16x8xf32>
    %46 = vector.shape_cast %42 : vector<16x8xf32> to vector<1x16x8xf32>
    %47 = vector.shape_cast %43 : vector<16x8xf32> to vector<1x16x8xf32>
    %48 = vector.shape_cast %44 : vector<16x8xf32> to vector<1x16x8xf32>
    %49 = vector.shape_cast %45 : vector<16x8xf32> to vector<1x16x8xf32>
    %50 = tpu.concatenate %46, %47, %48, %49 in 0 : vector<1x16x8xf32>, vector<1x16x8xf32>, vector<1x16x8xf32>, vector<1x16x8xf32> -> vector<4x16x8xf32>
    %51 = vector.extract_strided_slice %32 {offsets = [0, 64], sizes = [16, 8], strides = [1, 1]} : vector<16x96xf32> to vector<16x8xf32>
    %52 = vector.extract_strided_slice %32 {offsets = [0, 72], sizes = [16, 8], strides = [1, 1]} : vector<16x96xf32> to vector<16x8xf32>
    %53 = vector.extract_strided_slice %32 {offsets = [0, 80], sizes = [16, 8], strides = [1, 1]} : vector<16x96xf32> to vector<16x8xf32>
    %54 = vector.extract_strided_slice %32 {offsets = [0, 88], sizes = [16, 8], strides = [1, 1]} : vector<16x96xf32> to vector<16x8xf32>
    %55 = vector.shape_cast %51 : vector<16x8xf32> to vector<1x16x8xf32>
    %56 = vector.shape_cast %52 : vector<16x8xf32> to vector<1x16x8xf32>
    %57 = vector.shape_cast %53 : vector<16x8xf32> to vector<1x16x8xf32>
    %58 = vector.shape_cast %54 : vector<16x8xf32> to vector<1x16x8xf32>
    %59 = tpu.concatenate %55, %56, %57, %58 in 0 : vector<1x16x8xf32>, vector<1x16x8xf32>, vector<1x16x8xf32>, vector<1x16x8xf32> -> vector<4x16x8xf32>
    %cst_10 = arith.constant dense<0.000000e+00> : vector<4x16x16xf32>
    %60 = tpu.matmul %41, %50, %cst_10 {dimension_numbers = #tpu.dot_dimension_numbers<[2], [2], [1], [1], [0, 0, 0, 1, 1, 1], [0], [0]>} : vector<4x16x8xf32>, vector<4x16x8xf32>, vector<4x16x16xf32> -> vector<4x16x16xf32>
    %c0_11 = arith.constant 0 : index
    %c0_12 = arith.constant 0 : index
    %61 = vector.load %arg2[%c0_11, %c0_12] : memref<16x16xf32, #tpu.memory_space<vmem>>, vector<16x16xf32>
    %62 = vector.shape_cast %61 : vector<16x16xf32> to vector<1x16x16xf32>
    %63 = vector.broadcast %62 : vector<1x16x16xf32> to vector<4x16x16xf32>
    %64 = arith.addf %60, %63 : vector<4x16x16xf32>
    %cst_13 = arith.constant dense<0xFF800000> : vector<4x16xf32>
    %65 = vector.multi_reduction <maximumf>, %64, %cst_13 [2] : vector<4x16x16xf32> to vector<4x16xf32>
    %66 = vector.shape_cast %65 : vector<4x16xf32> to vector<4x16x1xf32>
    %67 = vector.broadcast %66 : vector<4x16x1xf32> to vector<4x16x16xf32>
    %68 = arith.subf %64, %67 : vector<4x16x16xf32>
    %69 = math.exp %68 : vector<4x16x16xf32>
    %cst_14 = arith.constant dense<0.000000e+00> : vector<4x16xf32>
    %70 = vector.multi_reduction <add>, %69, %cst_14 [2] : vector<4x16x16xf32> to vector<4x16xf32>
    %71 = vector.shape_cast %70 : vector<4x16xf32> to vector<4x16x1xf32>
    %72 = tpu.reciprocal %71 : vector<4x16x1xf32> -> vector<4x16x1xf32>
    %73 = vector.broadcast %72 : vector<4x16x1xf32> to vector<4x16x16xf32>
    %74 = arith.mulf %69, %73 : vector<4x16x16xf32>
    %cst_15 = arith.constant dense<0.000000e+00> : vector<4x16x8xf32>
    %75 = tpu.matmul %74, %59, %cst_15 {dimension_numbers = #tpu.dot_dimension_numbers<[2], [1], [1], [2], [0, 0, 0, 1, 1, 2], [0], [0]>} : vector<4x16x16xf32>, vector<4x16x8xf32>, vector<4x16x8xf32> -> vector<4x16x8xf32>
    %c0_16 = arith.constant 0 : index
    %c0_17 = arith.constant 0 : index
    %c0_18 = arith.constant 0 : index
    %76 = vector.load %arg5[%c0_16, %c0_17, %c0_18] : memref<4x8x32xf32, #tpu.memory_space<vmem>>, vector<4x8x32xf32>
    %cst_19 = arith.constant dense<0.000000e+00> : vector<4x16x32xf32>
    %77 = tpu.matmul %75, %76, %cst_19 {dimension_numbers = #tpu.dot_dimension_numbers<[2], [1], [1], [2], [0, 0, 0, 1, 1, 2], [0], [0]>} : vector<4x16x8xf32>, vector<4x8x32xf32>, vector<4x16x32xf32> -> vector<4x16x32xf32>
    %cst_20 = arith.constant dense<0.000000e+00> : vector<16x32xf32>
    %78 = vector.multi_reduction <add>, %77, %cst_20 [0] : vector<4x16x32xf32> to vector<16x32xf32>
    %79 = vector.broadcast %3 : vector<1x32xf32> to vector<16x32xf32>
    %80 = arith.addf %78, %79 : vector<16x32xf32>
    %81 = arith.addf %8, %80 : vector<16x32xf32>
    %cst_21 = arith.constant dense<0.000000e+00> : vector<16xf32>
    %82 = vector.multi_reduction <add>, %81, %cst_21 [1] : vector<16x32xf32> to vector<16xf32>
    %83 = vector.shape_cast %82 : vector<16xf32> to vector<16x1xf32>
    %cst_22 = arith.constant 3.200000e+01 : f32
    %84 = vector.broadcast %cst_22 : f32 to vector<16x1xf32>
    %85 = arith.divf %83, %84 : vector<16x1xf32>
    %86 = vector.broadcast %85 : vector<16x1xf32> to vector<16x32xf32>
    %87 = arith.subf %81, %86 : vector<16x32xf32>
    %88 = arith.mulf %87, %87 : vector<16x32xf32>
    %cst_23 = arith.constant dense<0.000000e+00> : vector<16xf32>
    %89 = vector.multi_reduction <add>, %88, %cst_23 [1] : vector<16x32xf32> to vector<16xf32>
    %90 = vector.shape_cast %89 : vector<16xf32> to vector<16x1xf32>
    %cst_24 = arith.constant 3.200000e+01 : f32
    %91 = vector.broadcast %cst_24 : f32 to vector<16x1xf32>
    %92 = arith.divf %90, %91 : vector<16x1xf32>
    %93 = vector.broadcast %85 : vector<16x1xf32> to vector<16x32xf32>
    %94 = arith.subf %81, %93 : vector<16x32xf32>
    %cst_25 = arith.constant 9.99999974E-6 : f32
    %95 = vector.broadcast %cst_25 : f32 to vector<16x1xf32>
    %96 = arith.addf %92, %95 : vector<16x1xf32>
    %97 = math.rsqrt %96 : vector<16x1xf32>
    %98 = vector.broadcast %97 : vector<16x1xf32> to vector<16x32xf32>
    %99 = arith.mulf %94, %98 : vector<16x32xf32>
    %100 = vector.broadcast %4 : vector<1x32xf32> to vector<16x32xf32>
    %101 = arith.mulf %99, %100 : vector<16x32xf32>
    %102 = vector.broadcast %5 : vector<1x32xf32> to vector<16x32xf32>
    %103 = arith.addf %101, %102 : vector<16x32xf32>
    %c0_26 = arith.constant 0 : index
    %c0_27 = arith.constant 0 : index
    %104 = vector.load %arg6[%c0_26, %c0_27] : memref<32x128xf32, #tpu.memory_space<vmem>>, vector<32x128xf32>
    %cst_28 = arith.constant dense<0.000000e+00> : vector<16x128xf32>
    %105 = tpu.matmul %103, %104, %cst_28 {dimension_numbers = #tpu.dot_dimension_numbers<[1], [0], [0], [1], [0, 0, 1, 1], [], []>} : vector<16x32xf32>, vector<32x128xf32>, vector<16x128xf32> -> vector<16x128xf32>
    %106 = vector.broadcast %7 : vector<1x128xf32> to vector<16x128xf32>
    %107 = arith.addf %105, %106 : vector<16x128xf32>
    %cst_29 = arith.constant 0.000000e+00 : f32
    %108 = vector.broadcast %cst_29 : f32 to vector<16x128xf32>
    %109 = arith.maximumf %107, %108 : vector<16x128xf32>
    %c0_30 = arith.constant 0 : index
    %c0_31 = arith.constant 0 : index
    %110 = vector.load %arg7[%c0_30, %c0_31] : memref<128x32xf32, #tpu.memory_space<vmem>>, vector<128x32xf32>
    %cst_32 = arith.constant dense<0.000000e+00> : vector<16x32xf32>
    %111 = tpu.matmul %109, %110, %cst_32 {dimension_numbers = #tpu.dot_dimension_numbers<[1], [0], [0], [1], [0, 0, 1, 1], [], []>} : vector<16x128xf32>, vector<128x32xf32>, vector<16x32xf32> -> vector<16x32xf32>
    %112 = vector.broadcast %6 : vector<1x32xf32> to vector<16x32xf32>
    %113 = arith.addf %111, %112 : vector<16x32xf32>
    %114 = arith.addf %81, %113 : vector<16x32xf32>
    %c0_33 = arith.constant 0 : index
    %c0_34 = arith.constant 0 : index
    %115 = vector.load %arg8[%c0_33, %c0_34] : memref<16x32xf32, #tpu.memory_space<vmem>>, vector<16x32xf32>
    tpu.vector_store %arg8[%c0_33, %c0_34], %114 {strides = array<i32>} : memref<16x32xf32, #tpu.memory_space<vmem>>, vector<16x32xf32>,
    return
  }
  func.func @transform_0(%arg0: i32) -> (i32, i32) {
    %c0_i32 = arith.constant 0 : i32
    %c0_i32_0 = arith.constant 0 : i32
    return %arg0, %c0_i32 : i32, i32
  }
  func.func @transform_1(%arg0: i32) -> (i32, i32) {
    %c0_i32 = arith.constant 0 : i32
    %c0_i32_0 = arith.constant 0 : i32
    %c0_i32_1 = arith.constant 0 : i32
    return %c0_i32, %c0_i32_0 : i32, i32
  }
  func.func @transform_2(%arg0: i32) -> (i32, i32) {
    %c0_i32 = arith.constant 0 : i32
    %c0_i32_0 = arith.constant 0 : i32
    %c0_i32_1 = arith.constant 0 : i32
    return %c0_i32, %c0_i32_0 : i32, i32
  }
  func.func @transform_3(%arg0: i32) -> (i32, i32) {
    %c0_i32 = arith.constant 0 : i32
    %c0_i32_0 = arith.constant 0 : i32
    %c0_i32_1 = arith.constant 0 : i32
    return %c0_i32, %c0_i32_0 : i32, i32
  }
  func.func @transform_4(%arg0: i32) -> (i32, i32, i32) {
    %c0_i32 = arith.constant 0 : i32
    %c0_i32_0 = arith.constant 0 : i32
    %c0_i32_1 = arith.constant 0 : i32
    %c0_i32_2 = arith.constant 0 : i32
    return %c0_i32, %c0_i32_0, %c0_i32_1 : i32, i32, i32
  }
  func.func @transform_5(%arg0: i32) -> (i32, i32) {
    %c0_i32 = arith.constant 0 : i32
    %c0_i32_0 = arith.constant 0 : i32
    %c0_i32_1 = arith.constant 0 : i32
    return %c0_i32, %c0_i32_0 : i32, i32
  }
  func.func @transform_6(%arg0: i32) -> (i32, i32) {
    %c0_i32 = arith.constant 0 : i32
    %c0_i32_0 = arith.constant 0 : i32
    %c0_i32_1 = arith.constant 0 : i32
    return %c0_i32, %c0_i32_0 : i32, i32
  }
  func.func @transform_7(%arg0: i32) -> (i32, i32) {
    %c0_i32 = arith.constant 0 : i32
    %c0_i32_0 = arith.constant 0 : i32
    return %arg0, %c0_i32 : i32, i32
  }
}

</mosaic_0001>

<llo_original>
// kernel: tpu_custom_call.1
$region0: #{tpu_custom_call.1}
  #allocation0 [shape = 'u32[]', space=smem, size = 0x4, offset = 0x4, fixed_abs, tag = 'smem constant byte address 0x4 - core index']
  #allocation1 [shape = 'u32[144,128]{1,0:T(1,128)}', space=vmem, size = 0x12000, scoped, tag = 'internal scratch']
  %s0 = inlined_call_operand.vmem [shape: f32[16,32], index: 0, kind: input, shape index: {}]
  %s1 = inlined_call_operand.vmem [shape: f32[16,16], index: 1, kind: input, shape index: {}]
  %s2 = inlined_call_operand.vmem [shape: f32[8,128], index: 2, kind: input, shape index: {}]
  %s3 = inlined_call_operand.vmem [shape: f32[32,96], index: 3, kind: input, shape index: {}]
  %s4 = inlined_call_operand.vmem [shape: f32[4,8,32], index: 4, kind: input, shape index: {}]
  %s5 = inlined_call_operand.vmem [shape: f32[32,128], index: 5, kind: input, shape index: {}]
  %s6 = inlined_call_operand.vmem [shape: f32[128,32], index: 6, kind: input, shape index: {}]
  %s7 = inlined_call_operand.hbm [shape: f32[16,32], index: 7, kind: output, shape index: {}]
  %s8 = sld [smem:[#allocation0]]
  $region38: #{tpu_custom_call.1} parent=0
    _
  %s10 = ssub.s32 1, %s8
  %s11 = scalar_select 0, %s10, %s8
  $region1: #{tpu_custom_call.1} parent=0
    #allocation2 [shape = 'u8[8192]{0}', space=vmem, size = 0x2000, scoped, tag = 'output window, operand 0, single buffered']
    #allocation3 [shape = 's32[1]{0}', space=sflag, size = 0x4, scoped, tag = 'scoped memory for tpu_custom_call.1']
    %12 = vsyncpa [#allocation3], 0
    // Predicated region
    $region2: #{tpu_custom_call.1} parent=1 // pred_check
      _
    $region3: #{tpu_custom_call.1} parent=1 // pred_check_branch
      %14 = sbr.rel (0) target = $region5
    $region4: #{tpu_custom_call.1} parent=1 // pred_region
      _
    $region5: #{tpu_custom_call.1} parent=1 // pred_fallthru
      _
    // Predicated region
    $region6: #{tpu_custom_call.1} parent=1 // pred_check
      _
    $region7: #{tpu_custom_call.1} parent=1 // pred_check_branch
      %16 = sbr.rel (0) target = $region9
    $region8: #{tpu_custom_call.1} parent=1 // pred_region
      _
    $region9: #{tpu_custom_call.1} parent=1 // pred_fallthru
      _
    // Predicated region
    $region10: #{tpu_custom_call.1} parent=1 // pred_check
      _
    $region11: #{tpu_custom_call.1} parent=1 // pred_check_branch
      %18 = sbr.rel (0) target = $region13
    $region12: #{tpu_custom_call.1} parent=1 // pred_region
      _
    $region13: #{tpu_custom_call.1} parent=1 // pred_fallthru
      _
    // Predicated region
    $region14: #{tpu_custom_call.1} parent=1 // pred_check
      _
    $region15: #{tpu_custom_call.1} parent=1 // pred_check_branch
      %20 = sbr.rel (0) target = $region17
    $region16: #{tpu_custom_call.1} parent=1 // pred_region
      _
    $region17: #{tpu_custom_call.1} parent=1 // pred_fallthru
      _
    // Predicated region
    $region18: #{tpu_custom_call.1} parent=1 // pred_check
      _
    $region19: #{tpu_custom_call.1} parent=1 // pred_check_branch
      %22 = sbr.rel (0) target = $region21
    $region20: #{tpu_custom_call.1} parent=1 // pred_region
      _
    $region21: #{tpu_custom_call.1} parent=1 // pred_fallthru
      _
    // Predicated region
    $region22: #{tpu_custom_call.1} parent=1 // pred_check
      _
    $region23: #{tpu_custom_call.1} parent=1 // pred_check_branch
      %24 = sbr.rel (0) target = $region25
    $region24: #{tpu_custom_call.1} parent=1 // pred_region
      _
    $region25: #{tpu_custom_call.1} parent=1 // pred_fallthru
      _
    // Predicated region
    $region26: #{tpu_custom_call.1} parent=1 // pred_check
      _
    $region27: #{tpu_custom_call.1} parent=1 // pred_check_branch
      %26 = sbr.rel (0) target = $region29
    $region28: #{tpu_custom_call.1} parent=1 // pred_region
      _
    $region29: #{tpu_custom_call.1} parent=1 // pred_fallthru
      _
    %v27 = vld [vmem:[%s2] sm:$0xff]
    %v28 = vld [vmem:[%s0] sm:$0xff]
    %v29 = vld [vmem:[%s0 + $0x8] sm:$0xff]
    %vm30 = vcmask 261120
    %v31 = vsel %vm30, %v28, 0.0
    %32 = vadd.xlane.f32.xlu0 %v31
    %v33 = vpop.xlane.xlu0 %32
    %v34 = vsel %vm30, %v29, 0.0
    %35 = vadd.xlane.f32.xlu0 %v34
    %v36 = vpop.xlane.xlu0 %35
    %v37 = vrcp.pop 32.0
    %v38 = vmul.f32 %v33, %v37
    %v39 = vmul.f32 %v36, %v37
    %v40 = vsub.f32 %v28, %v38
    %v41 = vsub.f32 %v29, %v39
    %v42 = vmul.f32 %v40, %v40
    %v43 = vmul.f32 %v41, %v41
    %v44 = vsel %vm30, %v42, 0.0
    %45 = vadd.xlane.f32.xlu0 %v44
    %v46 = vpop.xlane.xlu0 %45
    %v47 = vsel %vm30, %v43, 0.0
    %48 = vadd.xlane.f32.xlu0 %v47
    %v49 = vpop.xlane.xlu0 %48
    %v50 = vmul.f32 %v46, %v37
    %v51 = vmul.f32 %v49, %v37
    %v52 = vadd.f32 %v50, 1e-05
    %v53 = vadd.f32 %v51, 1e-05
    %v54 = vrsqrt.pop %v52
    %v55 = vrsqrt.pop %v53
    %v56 = vmul.f32 %v40, %v54
    %v57 = vmul.f32 %v41, %v55
    %v58 = vlaneseq
    %v59 = vshrl.u32 %v58, 7
    %v60 = vsub.s32 0, %v59
    %v61 = vrot.slane %v27, %v60
    %v62 = vmul.f32 %v56, %v61
    %v63 = vmul.f32 %v57, %v61
    %v64 = vlaneseq
    %v65 = vshrl.u32 %v64, 7
    %v66 = vsub.s32 1, %v65
    %v67 = vrot.slane %v27, %v66
    %v68 = vadd.f32 %v62, %v67
    %v69 = vadd.f32 %v63, %v67
    %v70 = vld [vmem:[%s3] sm:$0xff]
    %v71 = vld [vmem:[%s3 + $0x8] sm:$0xff]
    %v72 = vld [vmem:[%s3 + $0x10] sm:$0xff]
    %v73 = vld [vmem:[%s3 + $0x18] sm:$0xff]
    %v75 = vsel %vm30, %v68, 0
    %v78 = vsel %vm30, %v69, 0
    %80 = vmatprep.subr.mxu0 0.0
    %81 = vmatpush1.msra.mxu0 %v70
    %82 = vmatprep.subr.mxu0 0.0
    %83 = vmatpush1.msra.mxu0 %v71
    %84 = vmatprep.subr.mxu0 0.0
    %85 = vmatpush1.msra.mxu0 %v72
    %86 = vmatprep.subr.mxu0 0.0
    %87 = vmatpush1.msra.mxu0 %v73
    %88 = vmatprep.subr.mxu0 0.0
    %89 = vmatpush1.msra.mxu0 0.0
    %90 = vmatprep.subr.mxu0 0.0
    %91 = vmatpush1.msra.mxu0 0.0
    %92 = vmatprep.subr.mxu0 0.0
    %93 = vmatpush1.msra.mxu0 0.0
    %94 = vmatprep.subr.mxu0 0.0
    %95 = vmatpush1.msra.mxu0 0.0
    %96 = vmatprep.subr.mxu0 0.0
    %97 = vmatpush1.msra.mxu0 0.0
    %98 = vmatprep.subr.mxu0 0.0
    %99 = vmatpush1.msra.mxu0 0.0
    %100 = vmatprep.subr.mxu0 0.0
    %101 = vmatpush1.msra.mxu0 0.0
    %102 = vmatprep.subr.mxu0 0.0
    %103 = vmatpush1.msra.mxu0 0.0
    %104 = vmatprep.subr.mxu0 0.0
    %105 = vmatpush1.msra.mxu0 0.0
    %106 = vmatprep.subr.mxu0 0.0
    %107 = vmatpush1.msra.mxu0 0.0
    %108 = vmatprep.subr.mxu0 0.0
    %109 = vmatpush1.msra.mxu0 0.0
    %110 = vmatprep.subr.mxu0 0.0
    %111 = vmatpush1.msra.mxu0 0.0
    %112 = vmatprep.subr.mxu0 0.0
    %113 = vmatpush1.msra.mxu0 0.0
    %114 = vmatprep.subr.mxu0 0.0
    %115 = vmatpush1.msra.mxu0 0.0
    %116 = vmatprep.subr.mxu0 0.0
    %117 = vmatpush1.msra.mxu0 0.0
    %118 = vmatprep.subr.mxu0 0.0
    %119 = vmatpush1.msra.mxu0 0.0
    %120 = vmatprep.subr.mxu0 0.0
    %121 = vmatpush1.msra.mxu0 0.0
    %122 = vmatprep.subr.mxu0 0.0
    %123 = vmatpush1.msra.mxu0 0.0
    %124 = vmatprep.subr.mxu0 0.0
    %125 = vmatpush1.msra.mxu0 0.0
    %126 = vmatprep.subr.mxu0 0.0
    %127 = vmatpush1.msra.mxu0 0.0
    %128 = vmatprep.subr.mxu0 0.0
    %129 = vmatpush1.msra.mxu0 0.0
    %130 = vmatprep.subr.mxu0 0.0
    %131 = vmatpush1.msra.mxu0 0.0
    %132 = vmatprep.subr.mxu0 0.0
    %133 = vmatpush1.msra.mxu0 0.0
    %134 = vmatprep.subr.mxu0 0.0
    %135 = vmatpush1.msra.mxu0 0.0
    %136 = vmatprep.subr.mxu0 0.0
    %137 = vmatpush1.msra.mxu0 0.0
    %138 = vmatprep.subr.mxu0 0.0
    %139 = vmatpush1.msra.mxu0 0.0
    %140 = vmatprep.subr.mxu0 0.0
    %141 = vmatpush1.msra.mxu0 0.0
    %142 = vmatprep.subr.mxu0 0.0
    %143 = vmatpush1.msra.mxu0 0.0
    %144 = vmatprep.mubr.f32.mxu0 0.0
    %145 = vmatmul.mubr.f32.gmra.mrb[0].mxu0 %v75
    %v146 = vpop.f32.mrb[0].mxu0
    %v147 = vadd.f32 0.0, %v146
    %v148 = vpop.f32.mrb[0].mxu0
    %149 = vmatprep.mubr.f32.mxu0 0.0
    %150 = vmatmul.mubr.f32.gmra.mrb[0].mxu0 %v78
    %v151 = vpop.f32.mrb[0].mxu0
    %v152 = vadd.f32 0.0, %v151
    %v153 = vpop.f32.mrb[0].mxu0
    %154 = vdwg.mxu0
    %157 = vrot.lane.b32.xlu0 %v147, 120
    %v158 = vpop.permute.xlu0 %157
    %159 = vrot.lane.b32.xlu0 %v152, 120
    %v160 = vpop.permute.xlu0 %159
    %161 = vrot.lane.b32.xlu0 %v147, 112
    %v162 = vpop.permute.xlu0 %161
    %163 = vrot.lane.b32.xlu0 %v152, 112
    %v164 = vpop.permute.xlu0 %163
    %165 = vrot.lane.b32.xlu0 %v147, 104
    %v166 = vpop.permute.xlu0 %165
    %167 = vrot.lane.b32.xlu0 %v152, 104
    %v168 = vpop.permute.xlu0 %167
    %v169 = vld [vmem:[%s1] sm:$0xff]
    %v170 = vld [vmem:[%s1 + $0x8] sm:$0xff]
    %171 = vrot.lane.b32.xlu0 %v147, 96
    %v172 = vpop.permute.xlu0 %171
    %173 = vrot.lane.b32.xlu0 %v152, 96
    %v174 = vpop.permute.xlu0 %173
    %vm175 = vcmask 64512
    %v176 = vsel %vm175, %v147, 0
    %v178 = vsel %vm175, %v152, 0
    %v180 = vsel %vm175, %v172, 0
    %v182 = vsel %vm175, %v174, 0
    %184 = vmatprep.subr.mxu0 0.0
    %185 = vmatpush1.xpose.msra.mxu0 %v180
    %186 = vmatprep.subr.mxu0 0.0
    %187 = vmatpush1.xpose.msra.mxu0 %v182
    %188 = vmatprep.subr.mxu0 0.0
    %189 = vmatpush1.xpose.msra.mxu0 0.0
    %190 = vmatprep.subr.mxu0 0.0
    %191 = vmatpush1.xpose.msra.mxu0 0.0
    %192 = vmatprep.subr.mxu0 0.0
    %193 = vmatpush1.xpose.msra.mxu0 0.0
    %194 = vmatprep.subr.mxu0 0.0
    %195 = vmatpush1.xpose.msra.mxu0 0.0
    %196 = vmatprep.subr.mxu0 0.0
    %197 = vmatpush1.xpose.msra.mxu0 0.0
    %198 = vmatprep.subr.mxu0 0.0
    %199 = vmatpush1.xpose.msra.mxu0 0.0
    %200 = vmatprep.subr.mxu0 0.0
    %201 = vmatpush1.xpose.msra.mxu0 0.0
    %202 = vmatprep.subr.mxu0 0.0
    %203 = vmatpush1.xpose.msra.mxu0 0.0
    %204 = vmatprep.subr.mxu0 0.0
    %205 = vmatpush1.xpose.msra.mxu0 0.0
    %206 = vmatprep.subr.mxu0 0.0
    %207 = vmatpush1.xpose.msra.mxu0 0.0
    %208 = vmatprep.subr.mxu0 0.0
    %209 = vmatpush1.xpose.msra.mxu0 0.0
    %210 = vmatprep.subr.mxu0 0.0
    %211 = vmatpush1.xpose.msra.mxu0 0.0
    %212 = vmatprep.subr.mxu0 0.0
    %213 = vmatpush1.xpose.msra.mxu0 0.0
    %214 = vmatprep.subr.mxu0 0.0
    %215 = vmatpush1.xpose.msra.mxu0 0.0
    %216 = vmatprep.subr.mxu0 0.0
    %217 = vmatpush1.xpose.msra.mxu0 0.0
    %218 = vmatprep.subr.mxu0 0.0
    %219 = vmatpush1.xpose.msra.mxu0 0.0
    %220 = vmatprep.subr.mxu0 0.0
    %221 = vmatpush1.xpose.msra.mxu0 0.0
    %222 = vmatprep.subr.mxu0 0.0
    %223 = vmatpush1.xpose.msra.mxu0 0.0
    %224 = vmatprep.subr.mxu0 0.0
    %225 = vmatpush1.xpose.msra.mxu0 0.0
    %226 = vmatprep.subr.mxu0 0.0
    %227 = vmatpush1.xpose.msra.mxu0 0.0
    %228 = vmatprep.subr.mxu0 0.0
    %229 = vmatpush1.xpose.msra.mxu0 0.0
    %230 = vmatprep.subr.mxu0 0.0
    %231 = vmatpush1.xpose.msra.mxu0 0.0
    %232 = vmatprep.subr.mxu0 0.0
    %233 = vmatpush1.xpose.msra.mxu0 0.0
    %234 = vmatprep.subr.mxu0 0.0
    %235 = vmatpush1.xpose.msra.mxu0 0.0
    %236 = vmatprep.subr.mxu0 0.0
    %237 = vmatpush1.xpose.msra.mxu0 0.0
    %238 = vmatprep.subr.mxu0 0.0
    %239 = vmatpush1.xpose.msra.mxu0 0.0
    %240 = vmatprep.subr.mxu0 0.0
    %241 = vmatpush1.xpose.msra.mxu0 0.0
    %242 = vmatprep.subr.mxu0 0.0
    %243 = vmatpush1.xpose.msra.mxu0 0.0
    %244 = vmatprep.subr.mxu0 0.0
    %245 = vmatpush1.xpose.msra.mxu0 0.0
    %246 = vmatprep.subr.mxu0 0.0
    %247 = vmatpush1.xpose.msra.mxu0 0.0
    %248 = vmatprep.mubr.f32.mxu0 0.0
    %249 = vmatmul.mubr.f32.gmra.mrb[0].mxu0 %v176
    %v250 = vpop.f32.mrb[0].mxu0
    %v251 = vadd.f32 %v169, %v250
    %v252 = vpop.f32.mrb[0].mxu0
    %253 = vmatprep.mubr.f32.mxu0 0.0
    %254 = vmatmul.mubr.f32.gmra.mrb[0].mxu0 %v178
    %v255 = vpop.f32.mrb[0].mxu0
    %v256 = vadd.f32 %v170, %v255
    %v257 = vpop.f32.mrb[0].mxu0
    %258 = vdwg.mxu0
    %259 = vrot.lane.b32.xlu0 %v158, 96
    %v260 = vpop.permute.xlu0 %259
    %261 = vrot.lane.b32.xlu0 %v160, 96
    %v262 = vpop.permute.xlu0 %261
    %v263 = vsel %vm175, %v158, 0
    %v265 = vsel %vm175, %v160, 0
    %v267 = vsel %vm175, %v260, 0
    %v269 = vsel %vm175, %v262, 0
    %271 = vmatprep.subr.mxu0 0.0
    %272 = vmatpush1.xpose.msra.mxu0 %v267
    %273 = vmatprep.subr.mxu0 0.0
    %274 = vmatpush1.xpose.msra.mxu0 %v269
    %275 = vmatprep.subr.mxu0 0.0
    %276 = vmatpush1.xpose.msra.mxu0 0.0
    %277 = vmatprep.subr.mxu0 0.0
    %278 = vmatpush1.xpose.msra.mxu0 0.0
    %279 = vmatprep.subr.mxu0 0.0
    %280 = vmatpush1.xpose.msra.mxu0 0.0
    %281 = vmatprep.subr.mxu0 0.0
    %282 = vmatpush1.xpose.msra.mxu0 0.0
    %283 = vmatprep.subr.mxu0 0.0
    %284 = vmatpush1.xpose.msra.mxu0 0.0
    %285 = vmatprep.subr.mxu0 0.0
    %286 = vmatpush1.xpose.msra.mxu0 0.0
    %287 = vmatprep.subr.mxu0 0.0
    %288 = vmatpush1.xpose.msra.mxu0 0.0
    %289 = vmatprep.subr.mxu0 0.0
    %290 = vmatpush1.xpose.msra.mxu0 0.0
    %291 = vmatprep.subr.mxu0 0.0
    %292 = vmatpush1.xpose.msra.mxu0 0.0
    %293 = vmatprep.subr.mxu0 0.0
    %294 = vmatpush1.xpose.msra.mxu0 0.0
    %295 = vmatprep.subr.mxu0 0.0
    %296 = vmatpush1.xpose.msra.mxu0 0.0
    %297 = vmatprep.subr.mxu0 0.0
    %298 = vmatpush1.xpose.msra.mxu0 0.0
    %299 = vmatprep.subr.mxu0 0.0
    %300 = vmatpush1.xpose.msra.mxu0 0.0
    %301 = vmatprep.subr.mxu0 0.0
    %302 = vmatpush1.xpose.msra.mxu0 0.0
    %303 = vmatprep.subr.mxu0 0.0
    %304 = vmatpush1.xpose.msra.mxu0 0.0
    %305 = vmatprep.subr.mxu0 0.0
    %306 = vmatpush1.xpose.msra.mxu0 0.0
    %307 = vmatprep.subr.mxu0 0.0
    %308 = vmatpush1.xpose.msra.mxu0 0.0
    %309 = vmatprep.subr.mxu0 0.0
    %310 = vmatpush1.xpose.msra.mxu0 0.0
    %311 = vmatprep.subr.mxu0 0.0
    %312 = vmatpush1.xpose.msra.mxu0 0.0
    %313 = vmatprep.subr.mxu0 0.0
    %314 = vmatpush1.xpose.msra.mxu0 0.0
    %315 = vmatprep.subr.mxu0 0.0
    %316 = vmatpush1.xpose.msra.mxu0 0.0
    %317 = vmatprep.subr.mxu0 0.0
    %318 = vmatpush1.xpose.msra.mxu0 0.0
    %319 = vmatprep.subr.mxu0 0.0
    %320 = vmatpush1.xpose.msra.mxu0 0.0
    %321 = vmatprep.subr.mxu0 0.0
    %322 = vmatpush1.xpose.msra.mxu0 0.0
    %323 = vmatprep.subr.mxu0 0.0
    %324 = vmatpush1.xpose.msra.mxu0 0.0
    %325 = vmatprep.subr.mxu0 0.0
    %326 = vmatpush1.xpose.msra.mxu0 0.0
    %327 = vmatprep.subr.mxu0 0.0
    %328 = vmatpush1.xpose.msra.mxu0 0.0
    %329 = vmatprep.subr.mxu0 0.0
    %330 = vmatpush1.xpose.msra.mxu0 0.0
    %331 = vmatprep.subr.mxu0 0.0
    %332 = vmatpush1.xpose.msra.mxu0 0.0
    %333 = vmatprep.subr.mxu0 0.0
    %334 = vmatpush1.xpose.msra.mxu0 0.0
    %335 = vmatprep.mubr.f32.mxu0 0.0
    %336 = vmatmul.mubr.f32.gmra.mrb[0].mxu0 %v263
    %v337 = vpop.f32.mrb[0].mxu0
    %v338 = vadd.f32 %v169, %v337
    %v339 = vpop.f32.mrb[0].mxu0
    %340 = vmatprep.mubr.f32.mxu0 0.0
    %341 = vmatmul.mubr.f32.gmra.mrb[0].mxu0 %v265
    %v342 = vpop.f32.mrb[0].mxu0
    %v343 = vadd.f32 %v170, %v342
    %v344 = vpop.f32.mrb[0].mxu0
    %345 = vdwg.mxu0
    %346 = vrot.lane.b32.xlu0 %v162, 96
    %v347 = vpop.permute.xlu0 %346
    %348 = vrot.lane.b32.xlu0 %v164, 96
    %v349 = vpop.permute.xlu0 %348
    %v350 = vsel %vm175, %v162, 0
    %v352 = vsel %vm175, %v164, 0
    %v354 = vsel %vm175, %v347, 0
    %v356 = vsel %vm175, %v349, 0
    %358 = vmatprep.subr.mxu0 0.0
    %359 = vmatpush1.xpose.msra.mxu0 %v354
    %360 = vmatprep.subr.mxu0 0.0
    %361 = vmatpush1.xpose.msra.mxu0 %v356
    %362 = vmatprep.subr.mxu0 0.0
    %363 = vmatpush1.xpose.msra.mxu0 0.0
    %364 = vmatprep.subr.mxu0 0.0
    %365 = vmatpush1.xpose.msra.mxu0 0.0
    %366 = vmatprep.subr.mxu0 0.0
    %367 = vmatpush1.xpose.msra.mxu0 0.0
    %368 = vmatprep.subr.mxu0 0.0
    %369 = vmatpush1.xpose.msra.mxu0 0.0
    %370 = vmatprep.subr.mxu0 0.0
    %371 = vmatpush1.xpose.msra.mxu0 0.0
    %372 = vmatprep.subr.mxu0 0.0
    %373 = vmatpush1.xpose.msra.mxu0 0.0
    %374 = vmatprep.subr.mxu0 0.0
    %375 = vmatpush1.xpose.msra.mxu0 0.0
    %376 = vmatprep.subr.mxu0 0.0
    %377 = vmatpush1.xpose.msra.mxu0 0.0
    %378 = vmatprep.subr.mxu0 0.0
    %379 = vmatpush1.xpose.msra.mxu0 0.0
    %380 = vmatprep.subr.mxu0 0.0
    %381 = vmatpush1.xpose.msra.mxu0 0.0
    %382 = vmatprep.subr.mxu0 0.0
    %383 = vmatpush1.xpose.msra.mxu0 0.0
    %384 = vmatprep.subr.mxu0 0.0
    %385 = vmatpush1.xpose.msra.mxu0 0.0
    %386 = vmatprep.subr.mxu0 0.0
    %387 = vmatpush1.xpose.msra.mxu0 0.0
    %388 = vmatprep.subr.mxu0 0.0
    %389 = vmatpush1.xpose.msra.mxu0 0.0
    %390 = vmatprep.subr.mxu0 0.0
    %391 = vmatpush1.xpose.msra.mxu0 0.0
    %392 = vmatprep.subr.mxu0 0.0
    %393 = vmatpush1.xpose.msra.mxu0 0.0
    %394 = vmatprep.subr.mxu0 0.0
    %395 = vmatpush1.xpose.msra.mxu0 0.0
    %396 = vmatprep.subr.mxu0 0.0
    %397 = vmatpush1.xpose.msra.mxu0 0.0
    %398 = vmatprep.subr.mxu0 0.0
    %399 = vmatpush1.xpose.msra.mxu0 0.0
    %400 = vmatprep.subr.mxu0 0.0
    %401 = vmatpush1.xpose.msra.mxu0 0.0
    %402 = vmatprep.subr.mxu0 0.0
    %403 = vmatpush1.xpose.msra.mxu0 0.0
    %404 = vmatprep.subr.mxu0 0.0
    %405 = vmatpush1.xpose.msra.mxu0 0.0
    %406 = vmatprep.subr.mxu0 0.0
    %407 = vmatpush1.xpose.msra.mxu0 0.0
    %408 = vmatprep.subr.mxu0 0.0
    %409 = vmatpush1.xpose.msra.mxu0 0.0
    %410 = vmatprep.subr.mxu0 0.0
    %411 = vmatpush1.xpose.msra.mxu0 0.0
    %412 = vmatprep.subr.mxu0 0.0
    %413 = vmatpush1.xpose.msra.mxu0 0.0
    %414 = vmatprep.subr.mxu0 0.0
    %415 = vmatpush1.xpose.msra.mxu0 0.0
    %416 = vmatprep.subr.mxu0 0.0
    %417 = vmatpush1.xpose.msra.mxu0 0.0
    %418 = vmatprep.subr.mxu0 0.0
    %419 = vmatpush1.xpose.msra.mxu0 0.0
    %420 = vmatprep.subr.mxu0 0.0
    %421 = vmatpush1.xpose.msra.mxu0 0.0
    %422 = vmatprep.mubr.f32.mxu0 0.0
    %423 = vmatmul.mubr.f32.gmra.mrb[0].mxu0 %v350
    %v424 = vpop.f32.mrb[0].mxu0
    %v425 = vadd.f32 %v169, %v424
    %v426 = vpop.f32.mrb[0].mxu0
    %427 = vmatprep.mubr.f32.mxu0 0.0
    %428 = vmatmul.mubr.f32.gmra.mrb[0].mxu0 %v352
    %v429 = vpop.f32.mrb[0].mxu0
    %v430 = vadd.f32 %v170, %v429
    %v431 = vpop.f32.mrb[0].mxu0
    %432 = vdwg.mxu0
    %433 = vrot.lane.b32.xlu0 %v166, 96
    %v434 = vpop.permute.xlu0 %433
    %435 = vrot.lane.b32.xlu0 %v168, 96
    %v436 = vpop.permute.xlu0 %435
    %v437 = vsel %vm175, %v166, 0
    %v439 = vsel %vm175, %v168, 0
    %v441 = vsel %vm175, %v434, 0
    %v443 = vsel %vm175, %v436, 0
    %445 = vmatprep.subr.mxu0 0.0
    %446 = vmatpush1.xpose.msra.mxu0 %v441
    %447 = vmatprep.subr.mxu0 0.0
    %448 = vmatpush1.xpose.msra.mxu0 %v443
    %449 = vmatprep.subr.mxu0 0.0
    %450 = vmatpush1.xpose.msra.mxu0 0.0
    %451 = vmatprep.subr.mxu0 0.0
    %452 = vmatpush1.xpose.msra.mxu0 0.0
    %453 = vmatprep.subr.mxu0 0.0
    %454 = vmatpush1.xpose.msra.mxu0 0.0
    %455 = vmatprep.subr.mxu0 0.0
    %456 = vmatpush1.xpose.msra.mxu0 0.0
    %457 = vmatprep.subr.mxu0 0.0
    %458 = vmatpush1.xpose.msra.mxu0 0.0
    %459 = vmatprep.subr.mxu0 0.0
    %460 = vmatpush1.xpose.msra.mxu0 0.0
    %461 = vmatprep.subr.mxu0 0.0
    %462 = vmatpush1.xpose.msra.mxu0 0.0
    %463 = vmatprep.subr.mxu0 0.0
    %464 = vmatpush1.xpose.msra.mxu0 0.0
    %465 = vmatprep.subr.mxu0 0.0
    %466 = vmatpush1.xpose.msra.mxu0 0.0
    %467 = vmatprep.subr.mxu0 0.0
    %468 = vmatpush1.xpose.msra.mxu0 0.0
    %469 = vmatprep.subr.mxu0 0.0
    %470 = vmatpush1.xpose.msra.mxu0 0.0
    %471 = vmatprep.subr.mxu0 0.0
    %472 = vmatpush1.xpose.msra.mxu0 0.0
    %473 = vmatprep.subr.mxu0 0.0
    %474 = vmatpush1.xpose.msra.mxu0 0.0
    %475 = vmatprep.subr.mxu0 0.0
    %476 = vmatpush1.xpose.msra.mxu0 0.0
    %477 = vmatprep.subr.mxu0 0.0
    %478 = vmatpush1.xpose.msra.mxu0 0.0
    %479 = vmatprep.subr.mxu0 0.0
    %480 = vmatpush1.xpose.msra.mxu0 0.0
    %481 = vmatprep.subr.mxu0 0.0
    %482 = vmatpush1.xpose.msra.mxu0 0.0
    %483 = vmatprep.subr.mxu0 0.0
    %484 = vmatpush1.xpose.msra.mxu0 0.0
    %485 = vmatprep.subr.mxu0 0.0
    %486 = vmatpush1.xpose.msra.mxu0 0.0
    %487 = vmatprep.subr.mxu0 0.0
    %488 = vmatpush1.xpose.msra.mxu0 0.0
    %489 = vmatprep.subr.mxu0 0.0
    %490 = vmatpush1.xpose.msra.mxu0 0.0
    %491 = vmatprep.subr.mxu0 0.0
    %492 = vmatpush1.xpose.msra.mxu0 0.0
    %493 = vmatprep.subr.mxu0 0.0
    %494 = vmatpush1.xpose.msra.mxu0 0.0
    %495 = vmatprep.subr.mxu0 0.0
    %496 = vmatpush1.xpose.msra.mxu0 0.0
    %497 = vmatprep.subr.mxu0 0.0
    %498 = vmatpush1.xpose.msra.mxu0 0.0
    %499 = vmatprep.subr.mxu0 0.0
    %500 = vmatpush1.xpose.msra.mxu0 0.0
    %501 = vmatprep.subr.mxu0 0.0
    %502 = vmatpush1.xpose.msra.mxu0 0.0
    %503 = vmatprep.subr.mxu0 0.0
    %504 = vmatpush1.xpose.msra.mxu0 0.0
    %505 = vmatprep.subr.mxu0 0.0
    %506 = vmatpush1.xpose.msra.mxu0 0.0
    %507 = vmatprep.subr.mxu0 0.0
    %508 = vmatpush1.xpose.msra.mxu0 0.0
    %509 = vmatprep.mubr.f32.mxu0 0.0
    %510 = vmatmul.mubr.f32.gmra.mrb[0].mxu0 %v437
    %v511 = vpop.f32.mrb[0].mxu0
    %v512 = vadd.f32 %v169, %v511
    %v513 = vpop.f32.mrb[0].mxu0
    %514 = vmatprep.mubr.f32.mxu0 0.0
    %515 = vmatmul.mubr.f32.gmra.mrb[0].mxu0 %v439
    %v516 = vpop.f32.mrb[0].mxu0
    %v517 = vadd.f32 %v170, %v516
    %v518 = vpop.f32.mrb[0].mxu0
    %519 = vdwg.mxu0
    %vm520 = vcmask 130048
    %v521 = vsel %vm520, %v251, -inf
    %522 = vmax.xlane.f32.xlu0 %v521
    %v523 = vpop.xlane.xlu0 %522
    %v524 = vsel %vm520, %v256, -inf
    %525 = vmax.xlane.f32.xlu0 %v524
    %v526 = vpop.xlane.xlu0 %525
    %v527 = vsel %vm520, %v338, -inf
    %528 = vmax.xlane.f32.xlu0 %v527
    %v529 = vpop.xlane.xlu0 %528
    %v530 = vsel %vm520, %v343, -inf
    %531 = vmax.xlane.f32.xlu0 %v530
    %v532 = vpop.xlane.xlu0 %531
    %v533 = vsel %vm520, %v425, -inf
    %534 = vmax.xlane.f32.xlu0 %v533
    %v535 = vpop.xlane.xlu0 %534
    %v536 = vsel %vm520, %v430, -inf
    %537 = vmax.xlane.f32.xlu0 %v536
    %v538 = vpop.xlane.xlu0 %537
    %v539 = vsel %vm520, %v512, -inf
    %540 = vmax.xlane.f32.xlu0 %v539
    %v541 = vpop.xlane.xlu0 %540
    %v542 = vsel %vm520, %v517, -inf
    %543 = vmax.xlane.f32.xlu0 %v542
    %v544 = vpop.xlane.xlu0 %543
    %v545 = vsub.f32 %v251, %v523
    %v546 = vsub.f32 %v256, %v526
    %v547 = vsub.f32 %v338, %v529
    %v548 = vsub.f32 %v343, %v532
    %v549 = vsub.f32 %v425, %v535
    %v550 = vsub.f32 %v430, %v538
    %v551 = vsub.f32 %v512, %v541
    %v552 = vsub.f32 %v517, %v544
    %v553 = vmul.f32 %v545, 1.442695
    %v554 = vpow.pop %v553
    %v555 = vmul.f32 %v546, 1.442695
    %v556 = vpow.pop %v555
    %v557 = vmul.f32 %v547, 1.442695
    %v558 = vpow.pop %v557
    %v559 = vmul.f32 %v548, 1.442695
    %v560 = vpow.pop %v559
    %v561 = vmul.f32 %v549, 1.442695
    %v562 = vpow.pop %v561
    %v563 = vmul.f32 %v550, 1.442695
    %v564 = vpow.pop %v563
    %v565 = vmul.f32 %v551, 1.442695
    %v566 = vpow.pop %v565
    %v567 = vmul.f32 %v552, 1.442695
    %v568 = vpow.pop %v567
    %v569 = vsel %vm520, %v554, 0.0
    %570 = vadd.xlane.f32.xlu0 %v569
    %v571 = vpop.xlane.xlu0 %570
    %v572 = vsel %vm520, %v556, 0.0
    %573 = vadd.xlane.f32.xlu0 %v572
    %v574 = vpop.xlane.xlu0 %573
    %v575 = vsel %vm520, %v558, 0.0
    %576 = vadd.xlane.f32.xlu0 %v575
    %v577 = vpop.xlane.xlu0 %576
    %v578 = vsel %vm520, %v560, 0.0
    %579 = vadd.xlane.f32.xlu0 %v578
    %v580 = vpop.xlane.xlu0 %579
    %v581 = vsel %vm520, %v562, 0.0
    %582 = vadd.xlane.f32.xlu0 %v581
    %v583 = vpop.xlane.xlu0 %582
    %v584 = vsel %vm520, %v564, 0.0
    %585 = vadd.xlane.f32.xlu0 %v584
    %v586 = vpop.xlane.xlu0 %585
    %v587 = vsel %vm520, %v566, 0.0
    %588 = vadd.xlane.f32.xlu0 %v587
    %v589 = vpop.xlane.xlu0 %588
    %v590 = vsel %vm520, %v568, 0.0
    %591 = vadd.xlane.f32.xlu0 %v590
    %v592 = vpop.xlane.xlu0 %591
    %v593 = vrcp.pop %v571
    %v594 = vrcp.pop %v574
    %v595 = vrcp.pop %v577
    %v596 = vrcp.pop %v580
    %v597 = vrcp.pop %v583
    %v598 = vrcp.pop %v586
    %v599 = vrcp.pop %v589
    %v600 = vrcp.pop %v592
    %v601 = vmul.f32 %v554, %v593
    %v602 = vmul.f32 %v556, %v594
    %v603 = vmul.f32 %v558, %v595
    %v604 = vmul.f32 %v560, %v596
    %v605 = vmul.f32 %v562, %v597
    %v606 = vmul.f32 %v564, %v598
    %v607 = vmul.f32 %v566, %v599
    %v608 = vmul.f32 %v568, %v600
    %609 = vrot.lane.b32.xlu0 %v147, 64
    %v610 = vpop.permute.xlu0 %609
    %611 = vrot.lane.b32.xlu0 %v152, 64
    %v612 = vpop.permute.xlu0 %611
    %v616 = vsel %vm520, %v601, 0
    %v619 = vsel %vm520, %v602, 0
    %621 = vmatprep.subr.mxu0 0.0
    %622 = vmatpush1.msra.mxu0 %v610
    %623 = vmatprep.subr.mxu0 0.0
    %624 = vmatpush1.msra.mxu0 %v612
    %625 = vmatprep.subr.mxu0 0.0
    %626 = vmatpush1.msra.mxu0 0.0
    %627 = vmatprep.subr.mxu0 0.0
    %628 = vmatpush1.msra.mxu0 0.0
    %629 = vmatprep.subr.mxu0 0.0
    %630 = vmatpush1.msra.mxu0 0.0
    %631 = vmatprep.subr.mxu0 0.0
    %632 = vmatpush1.msra.mxu0 0.0
    %633 = vmatprep.subr.mxu0 0.0
    %634 = vmatpush1.msra.mxu0 0.0
    %635 = vmatprep.subr.mxu0 0.0
    %636 = vmatpush1.msra.mxu0 0.0
    %637 = vmatprep.subr.mxu0 0.0
    %638 = vmatpush1.msra.mxu0 0.0
    %639 = vmatprep.subr.mxu0 0.0
    %640 = vmatpush1.msra.mxu0 0.0
    %641 = vmatprep.subr.mxu0 0.0
    %642 = vmatpush1.msra.mxu0 0.0
    %643 = vmatprep.subr.mxu0 0.0
    %644 = vmatpush1.msra.mxu0 0.0
    %645 = vmatprep.subr.mxu0 0.0
    %646 = vmatpush1.msra.mxu0 0.0
    %647 = vmatprep.subr.mxu0 0.0
    %648 = vmatpush1.msra.mxu0 0.0
    %649 = vmatprep.subr.mxu0 0.0
    %650 = vmatpush1.msra.mxu0 0.0
    %651 = vmatprep.subr.mxu0 0.0
    %652 = vmatpush1.msra.mxu0 0.0
    %653 = vmatprep.subr.mxu0 0.0
    %654 = vmatpush1.msra.mxu0 0.0
    %655 = vmatprep.subr.mxu0 0.0
    %656 = vmatpush1.msra.mxu0 0.0
    %657 = vmatprep.subr.mxu0 0.0
    %658 = vmatpush1.msra.mxu0 0.0
    %659 = vmatprep.subr.mxu0 0.0
    %660 = vmatpush1.msra.mxu0 0.0
    %661 = vmatprep.subr.mxu0 0.0
    %662 = vmatpush1.msra.mxu0 0.0
    %663 = vmatprep.subr.mxu0 0.0
    %664 = vmatpush1.msra.mxu0 0.0
    %665 = vmatprep.subr.mxu0 0.0
    %666 = vmatpush1.msra.mxu0 0.0
    %667 = vmatprep.subr.mxu0 0.0
    %668 = vmatpush1.msra.mxu0 0.0
    %669 = vmatprep.subr.mxu0 0.0
    %670 = vmatpush1.msra.mxu0 0.0
    %671 = vmatprep.subr.mxu0 0.0
    %672 = vmatpush1.msra.mxu0 0.0
    %673 = vmatprep.subr.mxu0 0.0
    %674 = vmatpush1.msra.mxu0 0.0
    %675 = vmatprep.subr.mxu0 0.0
    %676 = vmatpush1.msra.mxu0 0.0
    %677 = vmatprep.subr.mxu0 0.0
    %678 = vmatpush1.msra.mxu0 0.0
    %679 = vmatprep.subr.mxu0 0.0
    %680 = vmatpush1.msra.mxu0 0.0
    %681 = vmatprep.subr.mxu0 0.0
    %682 = vmatpush1.msra.mxu0 0.0
    %683 = vmatprep.subr.mxu0 0.0
    %684 = vmatpush1.msra.mxu0 0.0
    %685 = vmatprep.mubr.f32.mxu0 0.0
    %686 = vmatmul.mubr.f32.gmra.mrb[0].mxu0 %v616
    %v687 = vpop.f32.mrb[0].mxu0
    %v688 = vadd.f32 0.0, %v687
    %v689 = vpop.f32.mrb[0].mxu0
    %690 = vmatprep.mubr.f32.mxu0 0.0
    %691 = vmatmul.mubr.f32.gmra.mrb[0].mxu0 %v619
    %v692 = vpop.f32.mrb[0].mxu0
    %v693 = vadd.f32 0.0, %v692
    %v694 = vpop.f32.mrb[0].mxu0
    %695 = vdwg.mxu0
    %696 = vrot.lane.b32.xlu0 %v158, 64
    %v697 = vpop.permute.xlu0 %696
    %698 = vrot.lane.b32.xlu0 %v160, 64
    %v699 = vpop.permute.xlu0 %698
    %v703 = vsel %vm520, %v603, 0
    %v706 = vsel %vm520, %v604, 0
    %708 = vmatprep.subr.mxu0 0.0
    %709 = vmatpush1.msra.mxu0 %v697
    %710 = vmatprep.subr.mxu0 0.0
    %711 = vmatpush1.msra.mxu0 %v699
    %712 = vmatprep.subr.mxu0 0.0
    %713 = vmatpush1.msra.mxu0 0.0
    %714 = vmatprep.subr.mxu0 0.0
    %715 = vmatpush1.msra.mxu0 0.0
    %716 = vmatprep.subr.mxu0 0.0
    %717 = vmatpush1.msra.mxu0 0.0
    %718 = vmatprep.subr.mxu0 0.0
    %719 = vmatpush1.msra.mxu0 0.0
    %720 = vmatprep.subr.mxu0 0.0
    %721 = vmatpush1.msra.mxu0 0.0
    %722 = vmatprep.subr.mxu0 0.0
    %723 = vmatpush1.msra.mxu0 0.0
    %724 = vmatprep.subr.mxu0 0.0
    %725 = vmatpush1.msra.mxu0 0.0
    %726 = vmatprep.subr.mxu0 0.0
    %727 = vmatpush1.msra.mxu0 0.0
    %728 = vmatprep.subr.mxu0 0.0
    %729 = vmatpush1.msra.mxu0 0.0
    %730 = vmatprep.subr.mxu0 0.0
    %731 = vmatpush1.msra.mxu0 0.0
    %732 = vmatprep.subr.mxu0 0.0
    %733 = vmatpush1.msra.mxu0 0.0
    %734 = vmatprep.subr.mxu0 0.0
    %735 = vmatpush1.msra.mxu0 0.0
    %736 = vmatprep.subr.mxu0 0.0
    %737 = vmatpush1.msra.mxu0 0.0
    %738 = vmatprep.subr.mxu0 0.0
    %739 = vmatpush1.msra.mxu0 0.0
    %740 = vmatprep.subr.mxu0 0.0
    %741 = vmatpush1.msra.mxu0 0.0
    %742 = vmatprep.subr.mxu0 0.0
    %743 = vmatpush1.msra.mxu0 0.0
    %744 = vmatprep.subr.mxu0 0.0
    %745 = vmatpush1.msra.mxu0 0.0
    %746 = vmatprep.subr.mxu0 0.0
    %747 = vmatpush1.msra.mxu0 0.0
    %748 = vmatprep.subr.mxu0 0.0
    %749 = vmatpush1.msra.mxu0 0.0
    %750 = vmatprep.subr.mxu0 0.0
    %751 = vmatpush1.msra.mxu0 0.0
    %752 = vmatprep.subr.mxu0 0.0
    %753 = vmatpush1.msra.mxu0 0.0
    %754 = vmatprep.subr.mxu0 0.0
    %755 = vmatpush1.msra.mxu0 0.0
    %756 = vmatprep.subr.mxu0 0.0
    %757 = vmatpush1.msra.mxu0 0.0
    %758 = vmatprep.subr.mxu0 0.0
    %759 = vmatpush1.msra.mxu0 0.0
    %760 = vmatprep.subr.mxu0 0.0
    %761 = vmatpush1.msra.mxu0 0.0
    %762 = vmatprep.subr.mxu0 0.0
    %763 = vmatpush1.msra.mxu0 0.0
    %764 = vmatprep.subr.mxu0 0.0
    %765 = vmatpush1.msra.mxu0 0.0
    %766 = vmatprep.subr.mxu0 0.0
    %767 = vmatpush1.msra.mxu0 0.0
    %768 = vmatprep.subr.mxu0 0.0
    %769 = vmatpush1.msra.mxu0 0.0
    %770 = vmatprep.subr.mxu0 0.0
    %771 = vmatpush1.msra.mxu0 0.0
    %772 = vmatprep.mubr.f32.mxu0 0.0
    %773 = vmatmul.mubr.f32.gmra.mrb[0].mxu0 %v703
    %v774 = vpop.f32.mrb[0].mxu0
    %v775 = vadd.f32 0.0, %v774
    %v776 = vpop.f32.mrb[0].mxu0
    %777 = vmatprep.mubr.f32.mxu0 0.0
    %778 = vmatmul.mubr.f32.gmra.mrb[0].mxu0 %v706
    %v779 = vpop.f32.mrb[0].mxu0
    %v780 = vadd.f32 0.0, %v779
    %v781 = vpop.f32.mrb[0].mxu0
    %782 = vdwg.mxu0
    %783 = vrot.lane.b32.xlu0 %v162, 64
    %v784 = vpop.permute.xlu0 %783
    %785 = vrot.lane.b32.xlu0 %v164, 64
    %v786 = vpop.permute.xlu0 %785
    %v790 = vsel %vm520, %v605, 0
    %v793 = vsel %vm520, %v606, 0
    %795 = vmatprep.subr.mxu0 0.0
    %796 = vmatpush1.msra.mxu0 %v784
    %797 = vmatprep.subr.mxu0 0.0
    %798 = vmatpush1.msra.mxu0 %v786
    %799 = vmatprep.subr.mxu0 0.0
    %800 = vmatpush1.msra.mxu0 0.0
    %801 = vmatprep.subr.mxu0 0.0
    %802 = vmatpush1.msra.mxu0 0.0
    %803 = vmatprep.subr.mxu0 0.0
    %804 = vmatpush1.msra.mxu0 0.0
    %805 = vmatprep.subr.mxu0 0.0
    %806 = vmatpush1.msra.mxu0 0.0
    %807 = vmatprep.subr.mxu0 0.0
    %808 = vmatpush1.msra.mxu0 0.0
    %809 = vmatprep.subr.mxu0 0.0
    %810 = vmatpush1.msra.mxu0 0.0
    %811 = vmatprep.subr.mxu0 0.0
    %812 = vmatpush1.msra.mxu0 0.0
    %813 = vmatprep.subr.mxu0 0.0
    %814 = vmatpush1.msra.mxu0 0.0
    %815 = vmatprep.subr.mxu0 0.0
    %816 = vmatpush1.msra.mxu0 0.0
    %817 = vmatprep.subr.mxu0 0.0
    %818 = vmatpush1.msra.mxu0 0.0
    %819 = vmatprep.subr.mxu0 0.0
    %820 = vmatpush1.msra.mxu0 0.0
    %821 = vmatprep.subr.mxu0 0.0
    %822 = vmatpush1.msra.mxu0 0.0
    %823 = vmatprep.subr.mxu0 0.0
    %824 = vmatpush1.msra.mxu0 0.0
    %825 = vmatprep.subr.mxu0 0.0
    %826 = vmatpush1.msra.mxu0 0.0
    %827 = vmatprep.subr.mxu0 0.0
    %828 = vmatpush1.msra.mxu0 0.0
    %829 = vmatprep.subr.mxu0 0.0
    %830 = vmatpush1.msra.mxu0 0.0
    %831 = vmatprep.subr.mxu0 0.0
    %832 = vmatpush1.msra.mxu0 0.0
    %833 = vmatprep.subr.mxu0 0.0
    %834 = vmatpush1.msra.mxu0 0.0
    %835 = vmatprep.subr.mxu0 0.0
    %836 = vmatpush1.msra.mxu0 0.0
    %837 = vmatprep.subr.mxu0 0.0
    %838 = vmatpush1.msra.mxu0 0.0
    %839 = vmatprep.subr.mxu0 0.0
    %840 = vmatpush1.msra.mxu0 0.0
    %841 = vmatprep.subr.mxu0 0.0
    %842 = vmatpush1.msra.mxu0 0.0
    %843 = vmatprep.subr.mxu0 0.0
    %844 = vmatpush1.msra.mxu0 0.0
    %845 = vmatprep.subr.mxu0 0.0
    %846 = vmatpush1.msra.mxu0 0.0
    %847 = vmatprep.subr.mxu0 0.0
    %848 = vmatpush1.msra.mxu0 0.0
    %849 = vmatprep.subr.mxu0 0.0
    %850 = vmatpush1.msra.mxu0 0.0
    %851 = vmatprep.subr.mxu0 0.0
    %852 = vmatpush1.msra.mxu0 0.0
    %853 = vmatprep.subr.mxu0 0.0
    %854 = vmatpush1.msra.mxu0 0.0
    %855 = vmatprep.subr.mxu0 0.0
    %856 = vmatpush1.msra.mxu0 0.0
    %857 = vmatprep.subr.mxu0 0.0
    %858 = vmatpush1.msra.mxu0 0.0
    %859 = vmatprep.mubr.f32.mxu0 0.0
    %860 = vmatmul.mubr.f32.gmra.mrb[0].mxu0 %v790
    %v861 = vpop.f32.mrb[0].mxu0
    %v862 = vadd.f32 0.0, %v861
    %v863 = vpop.f32.mrb[0].mxu0
    %864 = vmatprep.mubr.f32.mxu0 0.0
    %865 = vmatmul.mubr.f32.gmra.mrb[0].mxu0 %v793
    %v866 = vpop.f32.mrb[0].mxu0
    %v867 = vadd.f32 0.0, %v866
    %v868 = vpop.f32.mrb[0].mxu0
    %869 = vdwg.mxu0
    %870 = vrot.lane.b32.xlu0 %v166, 64
    %v871 = vpop.permute.xlu0 %870
    %872 = vrot.lane.b32.xlu0 %v168, 64
    %v873 = vpop.permute.xlu0 %872
    %v877 = vsel %vm520, %v607, 0
    %v880 = vsel %vm520, %v608, 0
    %882 = vmatprep.subr.mxu0 0.0
    %883 = vmatpush1.msra.mxu0 %v871
    %884 = vmatprep.subr.mxu0 0.0
    %885 = vmatpush1.msra.mxu0 %v873
    %886 = vmatprep.subr.mxu0 0.0
    %887 = vmatpush1.msra.mxu0 0.0
    %888 = vmatprep.subr.mxu0 0.0
    %889 = vmatpush1.msra.mxu0 0.0
    %890 = vmatprep.subr.mxu0 0.0
    %891 = vmatpush1.msra.mxu0 0.0
    %892 = vmatprep.subr.mxu0 0.0
    %893 = vmatpush1.msra.mxu0 0.0
    %894 = vmatprep.subr.mxu0 0.0
    %895 = vmatpush1.msra.mxu0 0.0
    %896 = vmatprep.subr.mxu0 0.0
    %897 = vmatpush1.msra.mxu0 0.0
    %898 = vmatprep.subr.mxu0 0.0
    %899 = vmatpush1.msra.mxu0 0.0
    %900 = vmatprep.subr.mxu0 0.0
    %901 = vmatpush1.msra.mxu0 0.0
    %902 = vmatprep.subr.mxu0 0.0
    %903 = vmatpush1.msra.mxu0 0.0
    %904 = vmatprep.subr.mxu0 0.0
    %905 = vmatpush1.msra.mxu0 0.0
    %906 = vmatprep.subr.mxu0 0.0
    %907 = vmatpush1.msra.mxu0 0.0
    %908 = vmatprep.subr.mxu0 0.0
    %909 = vmatpush1.msra.mxu0 0.0
    %910 = vmatprep.subr.mxu0 0.0
    %911 = vmatpush1.msra.mxu0 0.0
    %912 = vmatprep.subr.mxu0 0.0
    %913 = vmatpush1.msra.mxu0 0.0
    %914 = vmatprep.subr.mxu0 0.0
    %915 = vmatpush1.msra.mxu0 0.0
    %916 = vmatprep.subr.mxu0 0.0
    %917 = vmatpush1.msra.mxu0 0.0
    %918 = vmatprep.subr.mxu0 0.0
    %919 = vmatpush1.msra.mxu0 0.0
    %920 = vmatprep.subr.mxu0 0.0
    %921 = vmatpush1.msra.mxu0 0.0
    %922 = vmatprep.subr.mxu0 0.0
    %923 = vmatpush1.msra.mxu0 0.0
    %924 = vmatprep.subr.mxu0 0.0
    %925 = vmatpush1.msra.mxu0 0.0
    %926 = vmatprep.subr.mxu0 0.0
    %927 = vmatpush1.msra.mxu0 0.0
    %928 = vmatprep.subr.mxu0 0.0
    %929 = vmatpush1.msra.mxu0 0.0
    %930 = vmatprep.subr.mxu0 0.0
    %931 = vmatpush1.msra.mxu0 0.0
    %932 = vmatprep.subr.mxu0 0.0
    %933 = vmatpush1.msra.mxu0 0.0
    %934 = vmatprep.subr.mxu0 0.0
    %935 = vmatpush1.msra.mxu0 0.0
    %936 = vmatprep.subr.mxu0 0.0
    %937 = vmatpush1.msra.mxu0 0.0
    %938 = vmatprep.subr.mxu0 0.0
    %939 = vmatpush1.msra.mxu0 0.0
    %940 = vmatprep.subr.mxu0 0.0
    %941 = vmatpush1.msra.mxu0 0.0
    %942 = vmatprep.subr.mxu0 0.0
    %943 = vmatpush1.msra.mxu0 0.0
    %944 = vmatprep.subr.mxu0 0.0
    %945 = vmatpush1.msra.mxu0 0.0
    %946 = vmatprep.mubr.f32.mxu0 0.0
    %947 = vmatmul.mubr.f32.gmra.mrb[0].mxu0 %v877
    %v948 = vpop.f32.mrb[0].mxu0
    %v949 = vadd.f32 0.0, %v948
    %v950 = vpop.f32.mrb[0].mxu0
    %951 = vmatprep.mubr.f32.mxu0 0.0
    %952 = vmatmul.mubr.f32.gmra.mrb[0].mxu0 %v880
    %v953 = vpop.f32.mrb[0].mxu0
    %v954 = vadd.f32 0.0, %v953
    %v955 = vpop.f32.mrb[0].mxu0
    %956 = vdwg.mxu0
    %v957 = vld [vmem:[%s4] sm:$0xff]
    %v958 = vld [vmem:[%s4 + $0x8] sm:$0xff]
    %v959 = vld [vmem:[%s4 + $0x10] sm:$0xff]
    %v960 = vld [vmem:[%s4 + $0x18] sm:$0xff]
    %v962 = vsel %vm175, %v688, 0
    %v965 = vsel %vm175, %v693, 0
    %967 = vmatprep.subr.mxu0 0.0
    %968 = vmatpush1.msra.mxu0 %v957
    %969 = vmatprep.subr.mxu0 0.0
    %970 = vmatpush1.msra.mxu0 0.0
    %971 = vmatprep.subr.mxu0 0.0
    %972 = vmatpush1.msra.mxu0 0.0
    %973 = vmatprep.subr.mxu0 0.0
    %974 = vmatpush1.msra.mxu0 0.0
    %975 = vmatprep.subr.mxu0 0.0
    %976 = vmatpush1.msra.mxu0 0.0
    %977 = vmatprep.subr.mxu0 0.0
    %978 = vmatpush1.msra.mxu0 0.0
    %979 = vmatprep.subr.mxu0 0.0
    %980 = vmatpush1.msra.mxu0 0.0
    %981 = vmatprep.subr.mxu0 0.0
    %982 = vmatpush1.msra.mxu0 0.0
    %983 = vmatprep.subr.mxu0 0.0
    %984 = vmatpush1.msra.mxu0 0.0
    %985 = vmatprep.subr.mxu0 0.0
    %986 = vmatpush1.msra.mxu0 0.0
    %987 = vmatprep.subr.mxu0 0.0
    %988 = vmatpush1.msra.mxu0 0.0
    %989 = vmatprep.subr.mxu0 0.0
    %990 = vmatpush1.msra.mxu0 0.0
    %991 = vmatprep.subr.mxu0 0.0
    %992 = vmatpush1.msra.mxu0 0.0
    %993 = vmatprep.subr.mxu0 0.0
    %994 = vmatpush1.msra.mxu0 0.0
    %995 = vmatprep.subr.mxu0 0.0
    %996 = vmatpush1.msra.mxu0 0.0
    %997 = vmatprep.subr.mxu0 0.0
    %998 = vmatpush1.msra.mxu0 0.0
    %999 = vmatprep.subr.mxu0 0.0
    %1000 = vmatpush1.msra.mxu0 0.0
    %1001 = vmatprep.subr.mxu0 0.0
    %1002 = vmatpush1.msra.mxu0 0.0
    %1003 = vmatprep.subr.mxu0 0.0
    %1004 = vmatpush1.msra.mxu0 0.0
    %1005 = vmatprep.subr.mxu0 0.0
    %1006 = vmatpush1.msra.mxu0 0.0
    %1007 = vmatprep.subr.mxu0 0.0
    %1008 = vmatpush1.msra.mxu0 0.0
    %1009 = vmatprep.subr.mxu0 0.0
    %1010 = vmatpush1.msra.mxu0 0.0
    %1011 = vmatprep.subr.mxu0 0.0
    %1012 = vmatpush1.msra.mxu0 0.0
    %1013 = vmatprep.subr.mxu0 0.0
    %1014 = vmatpush1.msra.mxu0 0.0
    %1015 = vmatprep.subr.mxu0 0.0
    %1016 = vmatpush1.msra.mxu0 0.0
    %1017 = vmatprep.subr.mxu0 0.0
    %1018 = vmatpush1.msra.mxu0 0.0
    %1019 = vmatprep.subr.mxu0 0.0
    %1020 = vmatpush1.msra.mxu0 0.0
    %1021 = vmatprep.subr.mxu0 0.0
    %1022 = vmatpush1.msra.mxu0 0.0
    %1023 = vmatprep.subr.mxu0 0.0
    %1024 = vmatpush1.msra.mxu0 0.0
    %1025 = vmatprep.subr.mxu0 0.0
    %1026 = vmatpush1.msra.mxu0 0.0
    %1027 = vmatprep.subr.mxu0 0.0
    %1028 = vmatpush1.msra.mxu0 0.0
    %1029 = vmatprep.subr.mxu0 0.0
    %1030 = vmatpush1.msra.mxu0 0.0
    %1031 = vmatprep.mubr.f32.mxu0 0.0
    %1032 = vmatmul.mubr.f32.gmra.mrb[0].mxu0 %v962
    %v1033 = vpop.f32.mrb[0].mxu0
    %v1034 = vadd.f32 0.0, %v1033
    %v1035 = vpop.f32.mrb[0].mxu0
    %1036 = vmatprep.mubr.f32.mxu0 0.0
    %1037 = vmatmul.mubr.f32.gmra.mrb[0].mxu0 %v965
    %v1038 = vpop.f32.mrb[0].mxu0
    %v1039 = vadd.f32 0.0, %v1038
    %v1040 = vpop.f32.mrb[0].mxu0
    %1041 = vdwg.mxu0
    %v1043 = vsel %vm175, %v775, 0
    %v1046 = vsel %vm175, %v780, 0
    %1048 = vmatprep.subr.mxu0 0.0
    %1049 = vmatpush1.msra.mxu0 %v958
    %1050 = vmatprep.subr.mxu0 0.0
    %1051 = vmatpush1.msra.mxu0 0.0
    %1052 = vmatprep.subr.mxu0 0.0
    %1053 = vmatpush1.msra.mxu0 0.0
    %1054 = vmatprep.subr.mxu0 0.0
    %1055 = vmatpush1.msra.mxu0 0.0
    %1056 = vmatprep.subr.mxu0 0.0
    %1057 = vmatpush1.msra.mxu0 0.0
    %1058 = vmatprep.subr.mxu0 0.0
    %1059 = vmatpush1.msra.mxu0 0.0
    %1060 = vmatprep.subr.mxu0 0.0
    %1061 = vmatpush1.msra.mxu0 0.0
    %1062 = vmatprep.subr.mxu0 0.0
    %1063 = vmatpush1.msra.mxu0 0.0
    %1064 = vmatprep.subr.mxu0 0.0
    %1065 = vmatpush1.msra.mxu0 0.0
    %1066 = vmatprep.subr.mxu0 0.0
    %1067 = vmatpush1.msra.mxu0 0.0
    %1068 = vmatprep.subr.mxu0 0.0
    %1069 = vmatpush1.msra.mxu0 0.0
    %1070 = vmatprep.subr.mxu0 0.0
    %1071 = vmatpush1.msra.mxu0 0.0
    %1072 = vmatprep.subr.mxu0 0.0
    %1073 = vmatpush1.msra.mxu0 0.0
    %1074 = vmatprep.subr.mxu0 0.0
    %1075 = vmatpush1.msra.mxu0 0.0
    %1076 = vmatprep.subr.mxu0 0.0
    %1077 = vmatpush1.msra.mxu0 0.0
    %1078 = vmatprep.subr.mxu0 0.0
    %1079 = vmatpush1.msra.mxu0 0.0
    %1080 = vmatprep.subr.mxu0 0.0
    %1081 = vmatpush1.msra.mxu0 0.0
    %1082 = vmatprep.subr.mxu0 0.0
    %1083 = vmatpush1.msra.mxu0 0.0
    %1084 = vmatprep.subr.mxu0 0.0
    %1085 = vmatpush1.msra.mxu0 0.0
    %1086 = vmatprep.subr.mxu0 0.0
    %1087 = vmatpush1.msra.mxu0 0.0
    %1088 = vmatprep.subr.mxu0 0.0
    %1089 = vmatpush1.msra.mxu0 0.0
    %1090 = vmatprep.subr.mxu0 0.0
    %1091 = vmatpush1.msra.mxu0 0.0
    %1092 = vmatprep.subr.mxu0 0.0
    %1093 = vmatpush1.msra.mxu0 0.0
    %1094 = vmatprep.subr.mxu0 0.0
    %1095 = vmatpush1.msra.mxu0 0.0
    %1096 = vmatprep.subr.mxu0 0.0
    %1097 = vmatpush1.msra.mxu0 0.0
    %1098 = vmatprep.subr.mxu0 0.0
    %1099 = vmatpush1.msra.mxu0 0.0
    %1100 = vmatprep.subr.mxu0 0.0
    %1101 = vmatpush1.msra.mxu0 0.0
    %1102 = vmatprep.subr.mxu0 0.0
    %1103 = vmatpush1.msra.mxu0 0.0
    %1104 = vmatprep.subr.mxu0 0.0
    %1105 = vmatpush1.msra.mxu0 0.0
    %1106 = vmatprep.subr.mxu0 0.0
    %1107 = vmatpush1.msra.mxu0 0.0
    %1108 = vmatprep.subr.mxu0 0.0
    %1109 = vmatpush1.msra.mxu0 0.0
    %1110 = vmatprep.subr.mxu0 0.0
    %1111 = vmatpush1.msra.mxu0 0.0
    %1112 = vmatprep.mubr.f32.mxu0 0.0
    %1113 = vmatmul.mubr.f32.gmra.mrb[0].mxu0 %v1043
    %v1114 = vpop.f32.mrb[0].mxu0
    %v1115 = vadd.f32 0.0, %v1114
    %v1116 = vpop.f32.mrb[0].mxu0
    %1117 = vmatprep.mubr.f32.mxu0 0.0
    %1118 = vmatmul.mubr.f32.gmra.mrb[0].mxu0 %v1046
    %v1119 = vpop.f32.mrb[0].mxu0
    %v1120 = vadd.f32 0.0, %v1119
    %v1121 = vpop.f32.mrb[0].mxu0
    %1122 = vdwg.mxu0
    %v1124 = vsel %vm175, %v862, 0
    %v1127 = vsel %vm175, %v867, 0
    %1129 = vmatprep.subr.mxu0 0.0
    %1130 = vmatpush1.msra.mxu0 %v959
    %1131 = vmatprep.subr.mxu0 0.0
    %1132 = vmatpush1.msra.mxu0 0.0
    %1133 = vmatprep.subr.mxu0 0.0
    %1134 = vmatpush1.msra.mxu0 0.0
    %1135 = vmatprep.subr.mxu0 0.0
    %1136 = vmatpush1.msra.mxu0 0.0
    %1137 = vmatprep.subr.mxu0 0.0
    %1138 = vmatpush1.msra.mxu0 0.0
    %1139 = vmatprep.subr.mxu0 0.0
    %1140 = vmatpush1.msra.mxu0 0.0
    %1141 = vmatprep.subr.mxu0 0.0
    %1142 = vmatpush1.msra.mxu0 0.0
    %1143 = vmatprep.subr.mxu0 0.0
    %1144 = vmatpush1.msra.mxu0 0.0
    %1145 = vmatprep.subr.mxu0 0.0
    %1146 = vmatpush1.msra.mxu0 0.0
    %1147 = vmatprep.subr.mxu0 0.0
    %1148 = vmatpush1.msra.mxu0 0.0
    %1149 = vmatprep.subr.mxu0 0.0
    %1150 = vmatpush1.msra.mxu0 0.0
    %1151 = vmatprep.subr.mxu0 0.0
    %1152 = vmatpush1.msra.mxu0 0.0
    %1153 = vmatprep.subr.mxu0 0.0
    %1154 = vmatpush1.msra.mxu0 0.0
    %1155 = vmatprep.subr.mxu0 0.0
    %1156 = vmatpush1.msra.mxu0 0.0
    %1157 = vmatprep.subr.mxu0 0.0
    %1158 = vmatpush1.msra.mxu0 0.0
    %1159 = vmatprep.subr.mxu0 0.0
    %1160 = vmatpush1.msra.mxu0 0.0
    %1161 = vmatprep.subr.mxu0 0.0
    %1162 = vmatpush1.msra.mxu0 0.0
    %1163 = vmatprep.subr.mxu0 0.0
    %1164 = vmatpush1.msra.mxu0 0.0
    %1165 = vmatprep.subr.mxu0 0.0
    %1166 = vmatpush1.msra.mxu0 0.0
    %1167 = vmatprep.subr.mxu0 0.0
    %1168 = vmatpush1.msra.mxu0 0.0
    %1169 = vmatprep.subr.mxu0 0.0
    %1170 = vmatpush1.msra.mxu0 0.0
    %1171 = vmatprep.subr.mxu0 0.0
    %1172 = vmatpush1.msra.mxu0 0.0
    %1173 = vmatprep.subr.mxu0 0.0
    %1174 = vmatpush1.msra.mxu0 0.0
    %1175 = vmatprep.subr.mxu0 0.0
    %1176 = vmatpush1.msra.mxu0 0.0
    %1177 = vmatprep.subr.mxu0 0.0
    %1178 = vmatpush1.msra.mxu0 0.0
    %1179 = vmatprep.subr.mxu0 0.0
    %1180 = vmatpush1.msra.mxu0 0.0
    %1181 = vmatprep.subr.mxu0 0.0
    %1182 = vmatpush1.msra.mxu0 0.0
    %1183 = vmatprep.subr.mxu0 0.0
    %1184 = vmatpush1.msra.mxu0 0.0
    %1185 = vmatprep.subr.mxu0 0.0
    %1186 = vmatpush1.msra.mxu0 0.0
    %1187 = vmatprep.subr.mxu0 0.0
    %1188 = vmatpush1.msra.mxu0 0.0
    %1189 = vmatprep.subr.mxu0 0.0
    %1190 = vmatpush1.msra.mxu0 0.0
    %1191 = vmatprep.subr.mxu0 0.0
    %1192 = vmatpush1.msra.mxu0 0.0
    %1193 = vmatprep.mubr.f32.mxu0 0.0
    %1194 = vmatmul.mubr.f32.gmra.mrb[0].mxu0 %v1124
    %v1195 = vpop.f32.mrb[0].mxu0
    %v1196 = vadd.f32 0.0, %v1195
    %v1197 = vpop.f32.mrb[0].mxu0
    %1198 = vmatprep.mubr.f32.mxu0 0.0
    %1199 = vmatmul.mubr.f32.gmra.mrb[0].mxu0 %v1127
    %v1200 = vpop.f32.mrb[0].mxu0
    %v1201 = vadd.f32 0.0, %v1200
    %v1202 = vpop.f32.mrb[0].mxu0
    %1203 = vdwg.mxu0
    %v1205 = vsel %vm175, %v949, 0
    %v1208 = vsel %vm175, %v954, 0
    %1210 = vmatprep.subr.mxu0 0.0
    %1211 = vmatpush1.msra.mxu0 %v960
    %1212 = vmatprep.subr.mxu0 0.0
    %1213 = vmatpush1.msra.mxu0 0.0
    %1214 = vmatprep.subr.mxu0 0.0
    %1215 = vmatpush1.msra.mxu0 0.0
    %1216 = vmatprep.subr.mxu0 0.0
    %1217 = vmatpush1.msra.mxu0 0.0
    %1218 = vmatprep.subr.mxu0 0.0
    %1219 = vmatpush1.msra.mxu0 0.0
    %1220 = vmatprep.subr.mxu0 0.0
    %1221 = vmatpush1.msra.mxu0 0.0
    %1222 = vmatprep.subr.mxu0 0.0
    %1223 = vmatpush1.msra.mxu0 0.0
    %1224 = vmatprep.subr.mxu0 0.0
    %1225 = vmatpush1.msra.mxu0 0.0
    %1226 = vmatprep.subr.mxu0 0.0
    %1227 = vmatpush1.msra.mxu0 0.0
    %1228 = vmatprep.subr.mxu0 0.0
    %1229 = vmatpush1.msra.mxu0 0.0
    %1230 = vmatprep.subr.mxu0 0.0
    %1231 = vmatpush1.msra.mxu0 0.0
    %1232 = vmatprep.subr.mxu0 0.0
    %1233 = vmatpush1.msra.mxu0 0.0
    %1234 = vmatprep.subr.mxu0 0.0
    %1235 = vmatpush1.msra.mxu0 0.0
    %1236 = vmatprep.subr.mxu0 0.0
    %1237 = vmatpush1.msra.mxu0 0.0
    %1238 = vmatprep.subr.mxu0 0.0
    %1239 = vmatpush1.msra.mxu0 0.0
    %1240 = vmatprep.subr.mxu0 0.0
    %1241 = vmatpush1.msra.mxu0 0.0
    %1242 = vmatprep.subr.mxu0 0.0
    %1243 = vmatpush1.msra.mxu0 0.0
    %1244 = vmatprep.subr.mxu0 0.0
    %1245 = vmatpush1.msra.mxu0 0.0
    %1246 = vmatprep.subr.mxu0 0.0
    %1247 = vmatpush1.msra.mxu0 0.0
    %1248 = vmatprep.subr.mxu0 0.0
    %1249 = vmatpush1.msra.mxu0 0.0
    %1250 = vmatprep.subr.mxu0 0.0
    %1251 = vmatpush1.msra.mxu0 0.0
    %1252 = vmatprep.subr.mxu0 0.0
    %1253 = vmatpush1.msra.mxu0 0.0
    %1254 = vmatprep.subr.mxu0 0.0
    %1255 = vmatpush1.msra.mxu0 0.0
    %1256 = vmatprep.subr.mxu0 0.0
    %1257 = vmatpush1.msra.mxu0 0.0
    %1258 = vmatprep.subr.mxu0 0.0
    %1259 = vmatpush1.msra.mxu0 0.0
    %1260 = vmatprep.subr.mxu0 0.0
    %1261 = vmatpush1.msra.mxu0 0.0
    %1262 = vmatprep.subr.mxu0 0.0
    %1263 = vmatpush1.msra.mxu0 0.0
    %1264 = vmatprep.subr.mxu0 0.0
    %1265 = vmatpush1.msra.mxu0 0.0
    %1266 = vmatprep.subr.mxu0 0.0
    %1267 = vmatpush1.msra.mxu0 0.0
    %1268 = vmatprep.subr.mxu0 0.0
    %1269 = vmatpush1.msra.mxu0 0.0
    %1270 = vmatprep.subr.mxu0 0.0
    %1271 = vmatpush1.msra.mxu0 0.0
    %1272 = vmatprep.subr.mxu0 0.0
    %1273 = vmatpush1.msra.mxu0 0.0
    %1274 = vmatprep.mubr.f32.mxu0 0.0
    %1275 = vmatmul.mubr.f32.gmra.mrb[0].mxu0 %v1205
    %v1276 = vpop.f32.mrb[0].mxu0
    %v1277 = vadd.f32 0.0, %v1276
    %v1278 = vpop.f32.mrb[0].mxu0
    %1279 = vmatprep.mubr.f32.mxu0 0.0
    %1280 = vmatmul.mubr.f32.gmra.mrb[0].mxu0 %v1208
    %v1281 = vpop.f32.mrb[0].mxu0
    %v1282 = vadd.f32 0.0, %v1281
    %v1283 = vpop.f32.mrb[0].mxu0
    %1284 = vdwg.mxu0
    %v1285 = vsel %vm30, %v1034, 0.0
    %v1286 = vsel %vm30, %v1115, 0.0
    %v1287 = vadd.f32 %v1285, %v1286
    %v1288 = vsel %vm30, %v1196, 0.0
    %v1289 = vadd.f32 %v1287, %v1288
    %v1290 = vsel %vm30, %v1277, 0.0
    %v1291 = vadd.f32 %v1289, %v1290
    %v1292 = vsel %vm30, %v1039, 0.0
    %v1293 = vsel %vm30, %v1120, 0.0
    %v1294 = vadd.f32 %v1292, %v1293
    %v1295 = vsel %vm30, %v1201, 0.0
    %v1296 = vadd.f32 %v1294, %v1295
    %v1297 = vsel %vm30, %v1282, 0.0
    %v1298 = vadd.f32 %v1296, %v1297
    %v1299 = vlaneseq
    %v1300 = vshrl.u32 %v1299, 7
    %v1301 = vsub.s32 2, %v1300
    %v1302 = vrot.slane %v27, %v1301
    %v1303 = vadd.f32 %v1291, %v1302
    %v1304 = vadd.f32 %v1298, %v1302
    %v1305 = vadd.f32 %v28, %v1303
    %v1306 = vadd.f32 %v29, %v1304
    %v1307 = vsel %vm30, %v1305, 0.0
    %1308 = vadd.xlane.f32.xlu0 %v1307
    %v1309 = vpop.xlane.xlu0 %1308
    %v1310 = vsel %vm30, %v1306, 0.0
    %1311 = vadd.xlane.f32.xlu0 %v1310
    %v1312 = vpop.xlane.xlu0 %1311
    %v1313 = vmul.f32 %v1309, %v37
    %v1314 = vmul.f32 %v1312, %v37
    %v1315 = vsub.f32 %v1305, %v1313
    %v1316 = vsub.f32 %v1306, %v1314
    %v1317 = vmul.f32 %v1315, %v1315
    %v1318 = vmul.f32 %v1316, %v1316
    %v1319 = vsel %vm30, %v1317, 0.0
    %1320 = vadd.xlane.f32.xlu0 %v1319
    %v1321 = vpop.xlane.xlu0 %1320
    %v1322 = vsel %vm30, %v1318, 0.0
    %1323 = vadd.xlane.f32.xlu0 %v1322
    %v1324 = vpop.xlane.xlu0 %1323
    %v1325 = vmul.f32 %v1321, %v37
    %v1326 = vmul.f32 %v1324, %v37
    %v1327 = vadd.f32 %v1325, 1e-05
    %v1328 = vadd.f32 %v1326, 1e-05
    %v1329 = vrsqrt.pop %v1327
    %v1330 = vrsqrt.pop %v1328
    %v1331 = vmul.f32 %v1315, %v1329
    %v1332 = vmul.f32 %v1316, %v1330
    %v1333 = vlaneseq
    %v1334 = vshrl.u32 %v1333, 7
    %v1335 = vsub.s32 3, %v1334
    %v1336 = vrot.slane %v27, %v1335
    %v1337 = vmul.f32 %v1331, %v1336
    %v1338 = vmul.f32 %v1332, %v1336
    %v1339 = vlaneseq
    %v1340 = vshrl.u32 %v1339, 7
    %v1341 = vsub.s32 4, %v1340
    %v1342 = vrot.slane %v27, %v1341
    %v1343 = vadd.f32 %v1337, %v1342
    %v1344 = vadd.f32 %v1338, %v1342
    %v1345 = vld [vmem:[%s5] sm:$0xff]
    %v1346 = vld [vmem:[%s5 + $0x8] sm:$0xff]
    %v1347 = vld [vmem:[%s5 + $0x10] sm:$0xff]
    %v1348 = vld [vmem:[%s5 + $0x18] sm:$0xff]
    %v1349 = vlaneseq
    %v1350 = vshrl.u32 %v1349, 7
    %v1351 = vsub.s32 6, %v1350
    %v1352 = vrot.slane %v27, %v1351
    %v1354 = vsel %vm30, %v1343, 0
    %v1357 = vsel %vm30, %v1344, 0
    %1359 = vmatprep.subr.mxu0 0.0
    %1360 = vmatpush1.msra.mxu0 %v1345
    %1361 = vmatprep.subr.mxu0 0.0
    %1362 = vmatpush1.msra.mxu0 %v1346
    %1363 = vmatprep.subr.mxu0 0.0
    %1364 = vmatpush1.msra.mxu0 %v1347
    %1365 = vmatprep.subr.mxu0 0.0
    %1366 = vmatpush1.msra.mxu0 %v1348
    %1367 = vmatprep.subr.mxu0 0.0
    %1368 = vmatpush1.msra.mxu0 0.0
    %1369 = vmatprep.subr.mxu0 0.0
    %1370 = vmatpush1.msra.mxu0 0.0
    %1371 = vmatprep.subr.mxu0 0.0
    %1372 = vmatpush1.msra.mxu0 0.0
    %1373 = vmatprep.subr.mxu0 0.0
    %1374 = vmatpush1.msra.mxu0 0.0
    %1375 = vmatprep.subr.mxu0 0.0
    %1376 = vmatpush1.msra.mxu0 0.0
    %1377 = vmatprep.subr.mxu0 0.0
    %1378 = vmatpush1.msra.mxu0 0.0
    %1379 = vmatprep.subr.mxu0 0.0
    %1380 = vmatpush1.msra.mxu0 0.0
    %1381 = vmatprep.subr.mxu0 0.0
    %1382 = vmatpush1.msra.mxu0 0.0
    %1383 = vmatprep.subr.mxu0 0.0
    %1384 = vmatpush1.msra.mxu0 0.0
    %1385 = vmatprep.subr.mxu0 0.0
    %1386 = vmatpush1.msra.mxu0 0.0
    %1387 = vmatprep.subr.mxu0 0.0
    %1388 = vmatpush1.msra.mxu0 0.0
    %1389 = vmatprep.subr.mxu0 0.0
    %1390 = vmatpush1.msra.mxu0 0.0
    %1391 = vmatprep.subr.mxu0 0.0
    %1392 = vmatpush1.msra.mxu0 0.0
    %1393 = vmatprep.subr.mxu0 0.0
    %1394 = vmatpush1.msra.mxu0 0.0
    %1395 = vmatprep.subr.mxu0 0.0
    %1396 = vmatpush1.msra.mxu0 0.0
    %1397 = vmatprep.subr.mxu0 0.0
    %1398 = vmatpush1.msra.mxu0 0.0
    %1399 = vmatprep.subr.mxu0 0.0
    %1400 = vmatpush1.msra.mxu0 0.0
    %1401 = vmatprep.subr.mxu0 0.0
    %1402 = vmatpush1.msra.mxu0 0.0
    %1403 = vmatprep.subr.mxu0 0.0
    %1404 = vmatpush1.msra.mxu0 0.0
    %1405 = vmatprep.subr.mxu0 0.0
    %1406 = vmatpush1.msra.mxu0 0.0
    %1407 = vmatprep.subr.mxu0 0.0
    %1408 = vmatpush1.msra.mxu0 0.0
    %1409 = vmatprep.subr.mxu0 0.0
    %1410 = vmatpush1.msra.mxu0 0.0
    %1411 = vmatprep.subr.mxu0 0.0
    %1412 = vmatpush1.msra.mxu0 0.0
    %1413 = vmatprep.subr.mxu0 0.0
    %1414 = vmatpush1.msra.mxu0 0.0
    %1415 = vmatprep.subr.mxu0 0.0
    %1416 = vmatpush1.msra.mxu0 0.0
    %1417 = vmatprep.subr.mxu0 0.0
    %1418 = vmatpush1.msra.mxu0 0.0
    %1419 = vmatprep.subr.mxu0 0.0
    %1420 = vmatpush1.msra.mxu0 0.0
    %1421 = vmatprep.subr.mxu0 0.0
    %1422 = vmatpush1.msra.mxu0 0.0
    %1423 = vmatprep.mubr.f32.mxu0 0.0
    %1424 = vmatmul.mubr.f32.gmra.mrb[0].mxu0 %v1354
    %v1425 = vpop.f32.mrb[0].mxu0
    %v1426 = vadd.f32 %v1352, %v1425
    %v1427 = vpop.f32.mrb[0].mxu0
    %1428 = vmatprep.mubr.f32.mxu0 0.0
    %1429 = vmatmul.mubr.f32.gmra.mrb[0].mxu0 %v1357
    %v1430 = vpop.f32.mrb[0].mxu0
    %v1431 = vadd.f32 %v1352, %v1430
    %v1432 = vpop.f32.mrb[0].mxu0
    %1433 = vdwg.mxu0
    %v1434 = vmax.f32 %v1426, 0.0
    %v1435 = vmax.f32 %v1431, 0.0
    %v1436 = vld [vmem:[%s6] sm:$0xff]
    %v1437 = vld [vmem:[%s6 + $0x8] sm:$0xff]
    %v1438 = vld [vmem:[%s6 + $0x10] sm:$0xff]
    %v1439 = vld [vmem:[%s6 + $0x18] sm:$0xff]
    %v1440 = vld [vmem:[%s6 + $0x20] sm:$0xff]
    %v1441 = vld [vmem:[%s6 + $0x28] sm:$0xff]
    %v1442 = vld [vmem:[%s6 + $0x30] sm:$0xff]
    %v1443 = vld [vmem:[%s6 + $0x38] sm:$0xff]
    %v1444 = vld [vmem:[%s6 + $0x40] sm:$0xff]
    %v1445 = vld [vmem:[%s6 + $0x48] sm:$0xff]
    %v1446 = vld [vmem:[%s6 + $0x50] sm:$0xff]
    %v1447 = vld [vmem:[%s6 + $0x58] sm:$0xff]
    %v1448 = vld [vmem:[%s6 + $0x60] sm:$0xff]
    %v1449 = vld [vmem:[%s6 + $0x68] sm:$0xff]
    %v1450 = vld [vmem:[%s6 + $0x70] sm:$0xff]
    %v1451 = vld [vmem:[%s6 + $0x78] sm:$0xff]
    %v1452 = vlaneseq
    %v1453 = vshrl.u32 %v1452, 7
    %v1454 = vsub.s32 5, %v1453
    %v1455 = vrot.slane %v27, %v1454
    %1456 = vmatprep.subr.mxu0 0.0
    %1457 = vmatpush1.msra.mxu0 %v1436
    %1458 = vmatprep.subr.mxu0 0.0
    %1459 = vmatpush1.msra.mxu0 %v1437
    %1460 = vmatprep.subr.mxu0 0.0
    %1461 = vmatpush1.msra.mxu0 %v1438
    %1462 = vmatprep.subr.mxu0 0.0
    %1463 = vmatpush1.msra.mxu0 %v1439
    %1464 = vmatprep.subr.mxu0 0.0
    %1465 = vmatpush1.msra.mxu0 %v1440
    %1466 = vmatprep.subr.mxu0 0.0
    %1467 = vmatpush1.msra.mxu0 %v1441
    %1468 = vmatprep.subr.mxu0 0.0
    %1469 = vmatpush1.msra.mxu0 %v1442
    %1470 = vmatprep.subr.mxu0 0.0
    %1471 = vmatpush1.msra.mxu0 %v1443
    %1472 = vmatprep.subr.mxu0 0.0
    %1473 = vmatpush1.msra.mxu0 %v1444
    %1474 = vmatprep.subr.mxu0 0.0
    %1475 = vmatpush1.msra.mxu0 %v1445
    %1476 = vmatprep.subr.mxu0 0.0
    %1477 = vmatpush1.msra.mxu0 %v1446
    %1478 = vmatprep.subr.mxu0 0.0
    %1479 = vmatpush1.msra.mxu0 %v1447
    %1480 = vmatprep.subr.mxu0 0.0
    %1481 = vmatpush1.msra.mxu0 %v1448
    %1482 = vmatprep.subr.mxu0 0.0
    %1483 = vmatpush1.msra.mxu0 %v1449
    %1484 = vmatprep.subr.mxu0 0.0
    %1485 = vmatpush1.msra.mxu0 %v1450
    %1486 = vmatprep.subr.mxu0 0.0
    %1487 = vmatpush1.msra.mxu0 %v1451
    %1488 = vmatprep.subr.mxu0 0.0
    %1489 = vmatpush1.msra.mxu0 0.0
    %1490 = vmatprep.subr.mxu0 0.0
    %1491 = vmatpush1.msra.mxu0 0.0
    %1492 = vmatprep.subr.mxu0 0.0
    %1493 = vmatpush1.msra.mxu0 0.0
    %1494 = vmatprep.subr.mxu0 0.0
    %1495 = vmatpush1.msra.mxu0 0.0
    %1496 = vmatprep.subr.mxu0 0.0
    %1497 = vmatpush1.msra.mxu0 0.0
    %1498 = vmatprep.subr.mxu0 0.0
    %1499 = vmatpush1.msra.mxu0 0.0
    %1500 = vmatprep.subr.mxu0 0.0
    %1501 = vmatpush1.msra.mxu0 0.0
    %1502 = vmatprep.subr.mxu0 0.0
    %1503 = vmatpush1.msra.mxu0 0.0
    %1504 = vmatprep.subr.mxu0 0.0
    %1505 = vmatpush1.msra.mxu0 0.0
    %1506 = vmatprep.subr.mxu0 0.0
    %1507 = vmatpush1.msra.mxu0 0.0
    %1508 = vmatprep.subr.mxu0 0.0
    %1509 = vmatpush1.msra.mxu0 0.0
    %1510 = vmatprep.subr.mxu0 0.0
    %1511 = vmatpush1.msra.mxu0 0.0
    %1512 = vmatprep.subr.mxu0 0.0
    %1513 = vmatpush1.msra.mxu0 0.0
    %1514 = vmatprep.subr.mxu0 0.0
    %1515 = vmatpush1.msra.mxu0 0.0
    %1516 = vmatprep.subr.mxu0 0.0
    %1517 = vmatpush1.msra.mxu0 0.0
    %1518 = vmatprep.subr.mxu0 0.0
    %1519 = vmatpush1.msra.mxu0 0.0
    %1520 = vmatprep.mubr.f32.mxu0 0.0
    %1521 = vmatmul.mubr.f32.gmra.mrb[0].mxu0 %v1434
    %v1522 = vpop.f32.mrb[0].mxu0
    %v1523 = vadd.f32 %v1455, %v1522
    %v1524 = vpop.f32.mrb[0].mxu0
    %1525 = vmatprep.mubr.f32.mxu0 0.0
    %1526 = vmatmul.mubr.f32.gmra.mrb[0].mxu0 %v1435
    %v1527 = vpop.f32.mrb[0].mxu0
    %v1528 = vadd.f32 %v1455, %v1527
    %v1529 = vpop.f32.mrb[0].mxu0
    %1530 = vdwg.mxu0
    %v1531 = vadd.f32 %v1305, %v1523
    %v1532 = vadd.f32 %v1306, %v1528
    %1533 = vst.msk [vmem:[#allocation2] sm:$0xff] %vm30, %v1531
    %1534 = vst.msk [vmem:[#allocation2 + $0x8] sm:$0xff] %vm30, %v1532
    // Predicated region
    $region30: #{tpu_custom_call.1} parent=1 // pred_check
      _
    $region31: #{tpu_custom_call.1} parent=1 // pred_check_branch
      %1536 = sbr.rel (0) target = $region33
    $region32: #{tpu_custom_call.1} parent=1 // pred_region
      %s1538 = ssub.s32 256, 256
      %1539 = vsyncadd [#allocation3], %s1538
      %s1540 = sshll.u32 [#allocation2], 4
      %s1541 = int_to_ptr.vmem [resolvable:$true] %s1540
      %1546 = dma.vmem_to_hbm [thread:$0]  %s1541, 256, %s7, [#allocation3], 128, 128, 8
    $region33: #{tpu_custom_call.1} parent=1 // pred_fallthru
      _
    // Predicated region
    $region34: #{tpu_custom_call.1} parent=1 // pred_check
      _
    $region35: #{tpu_custom_call.1} parent=1 // pred_check_branch
      %1548 = sbr.rel (0) target = $region37
    $region36: #{tpu_custom_call.1} parent=1 // pred_region
      %1549 = dma.done [#allocation3], 256
    $region37: #{tpu_custom_call.1} parent=1 // pred_fallthru
      _
    %1550 = vsyncpa [#allocation3], 1

</llo_original>
